<compile_context>
chip_gen: v5e
topology: v5e:2x2
jax: 0.10.0
libtpu: 0.0.40
codegen_flags: <defaults>
</compile_context>

<pallas_src>
import numpy as np
import jax
import jax.numpy as jnp
from jax.experimental import pallas as pl
from jax.experimental.pallas import tpu as pltpu


def _round_up(x, m):
    return ((x + m - 1) // m) * m


def graph_convolution(x, adj, weight, *, tm=512, tk=512):
    """output = adj @ (x @ weight) as a single fused block-sparse Pallas kernel.

    x      : [N, F_in]   node features
    adj    : [N, N]      dense storage of the (possibly sparse) adjacency
    weight : [F_in, F_out]

    The adjacency block structure / schedule is computed host-side (numpy), so
    call this outside jit (or precompute the schedule once per graph).
    """
    N, F_in = x.shape
    Fi2, F_out = weight.shape
    assert Fi2 == F_in and adj.shape == (N, N)

    # ---- pad to tile-friendly sizes (zero padding does not change the math) ----
    F_in_p = _round_up(F_in, 128)
    F_out_p = _round_up(F_out, 128)       # lane-dense output block -> unmasked stores
    Nr = _round_up(N, tm)                 # adj rows / output rows
    Nc = _round_up(N, tk)                 # adj cols / x rows
    n_i, n_k = Nr // tm, Nc // tk

    # ---- host-side (numpy) block-sparsity structure & flattened schedule ----
    adj_np = np.asarray(adj)
    is_binary = bool(np.all((adj_np == 0) | (adj_np == 1)))
    adj_dtype = jnp.int8 if is_binary else jnp.bfloat16
    adj_bytes = 1 if is_binary else 2
    # TODO(synk): a weighted/normalized adjacency stored as bf16 rounds to ~3
    # decimal digits; keep f32 adj storage if that precision matters.

    adj_nz = np.zeros((Nr, Nc), dtype=bool)
    adj_nz[:N, :N] = adj_np != 0
    blk_nz = adj_nz.reshape(n_i, tm, n_k, tk).any(axis=(1, 3))     # [n_i, n_k]

    sched = []   # (row_block, col_block, is_first_step_of_this_row_block)
    for r in range(n_i):
        cols = np.flatnonzero(blk_nz[r])
        if cols.size == 0:
            # Dummy step on a zero tile so this row block's output gets zeroed.
            cols = np.array([0])
        for j, c in enumerate(cols):
            sched.append((r, int(c), 1 if j == 0 else 0))
    n_adj = len(sched)
    T = n_k + n_adj                       # precompute phase + adjacency phase

    xblk = np.full((T,), n_k - 1, np.int32)
    xblk[:n_k] = np.arange(n_k, dtype=np.int32)   # x DMA'd only during phase 1
    arow = np.empty((T,), np.int32)
    acol = np.empty((T,), np.int32)
    ofirst = np.zeros((T,), np.int32)
    r0, c0, _ = sched[0]
    arow[:n_k] = r0                       # phase 1 prefetches the first adj tile
    acol[:n_k] = c0
    for s, (r, c, f) in enumerate(sched):
        arow[n_k + s] = r
        acol[n_k + s] = c
        ofirst[n_k + s] = f

    # ---- padded device operands (bf16 MXU inputs; adj int8 if binary) ----
    x_p = jnp.zeros((Nc, F_in_p), jnp.bfloat16).at[:N, :F_in].set(
        x.astype(jnp.bfloat16))
    w_p = jnp.zeros((F_in_p, F_out_p), jnp.bfloat16).at[:F_in, :F_out].set(
        weight.astype(jnp.bfloat16))
    adj_p = jnp.zeros((Nr, Nc), adj_dtype).at[:N, :N].set(
        adj.astype(adj_dtype))

    # ---- kernel (closure over the static phase boundary n_k) ----
    def kernel(xblk_ref, arow_ref, acol_ref, ofirst_ref,   # SMEM (scalar prefetch)
               x_ref, w_ref, adj_ref, o_ref, cache_ref):   # VMEM tiles + scratch
        t = pl.program_id(0)

        # Phase 1 (t < n_k): fill the support cache. cache[t] = x_block[t] @ w.
        @pl.when(t < n_k)
        def _fill_cache():
            support = jnp.dot(x_ref[...], w_ref[...],
                              preferred_element_type=jnp.float32)
            cache_ref[t] = support.astype(jnp.bfloat16)

        # Phase 2 (t >= n_k): block-sparse adjacency matmul, accumulate in o_ref.
        is_adj = t >= n_k

        @pl.when(jnp.logical_and(is_adj, ofirst_ref[t] == 1))
        def _zero_out():
            o_ref[...] = jnp.zeros_like(o_ref)

        @pl.when(is_adj)
        def _accumulate():
            c = acol_ref[t]
            a_tile = adj_ref[...].astype(jnp.bfloat16)     # int8/bf16 -> bf16
            o_ref[...] += jnp.dot(a_tile, cache_ref[c],
                                  preferred_element_type=jnp.float32)

    # ---- VMEM budget (double-buffered inputs/outputs + resident cache) ----
    cache_bytes = n_k * tk * F_out_p * 2
    vmem_bytes = (2 * tk * F_in_p * 2          # x (bf16, double buffer)
                  + 2 * F_in_p * F_out_p * 2   # weight
                  + 2 * tm * tk * adj_bytes    # adj tile
                  + 2 * tm * F_out_p * 4       # f32 output block
                  + cache_bytes)               # support cache
    # Cap at 48 MiB: safe on v5e/v6e (128 MiB) and within v7x's 64 MiB VMEM.
    vmem_limit = int(min(max(vmem_bytes + (4 << 20), 32 << 20), 48 << 20))

    cost = pl.CostEstimate(
        flops=(2 * n_k * tk * F_in_p * F_out_p          # support precompute
               + 2 * n_adj * tm * tk * F_out_p),        # adjacency matmul
        transcendentals=0,
        bytes_accessed=(Nc * F_in_p * 2 + F_in_p * F_out_p * 2
                        + n_adj * tm * tk * adj_bytes + Nr * F_out_p * 4),
    )

    out_p = pl.pallas_call(
        kernel,
        out_shape=jax.ShapeDtypeStruct((Nr, F_out_p), jnp.float32),
        grid_spec=pltpu.PrefetchScalarGridSpec(
            num_scalar_prefetch=4,
            grid=(T,),
            in_specs=[
                # x rows: one column block per phase-1 step; index repeats the
                # last block afterwards -> no further x DMA in phase 2.
                pl.BlockSpec((tk, F_in_p), lambda t, xb, ar, ac, of: (xb[t], 0)),
                # weight: constant block index -> fetched once, stays resident.
                pl.BlockSpec((F_in_p, F_out_p), lambda t, xb, ar, ac, of: (0, 0)),
                # adjacency tile for this schedule step (first tile prefetched
                # during phase 1 since its index is constant there).
                pl.BlockSpec((tm, tk), lambda t, xb, ar, ac, of: (ar[t], ac[t])),
            ],
            out_specs=pl.BlockSpec((tm, F_out_p),
                                   lambda t, xb, ar, ac, of: (ar[t], 0)),
            scratch_shapes=[pltpu.VMEM((n_k, tk, F_out_p), jnp.bfloat16)],
        ),
        compiler_params=pltpu.CompilerParams(
            dimension_semantics=("arbitrary",),      # sequential: cache + accumulation
            vmem_limit_bytes=vmem_limit,
        ),
        cost_estimate=cost,
    )(jnp.asarray(xblk), jnp.asarray(arow), jnp.asarray(acol),
      jnp.asarray(ofirst), x_p, w_p, adj_p)

    return out_p[:N, :F_out]


if __name__ == "__main__":
    # Shapes consistent with the module: adj is (28*28) x (28*28); feature dims
    # deliberately not multiples of 128 to exercise the padding path.
    N = 28 * 28      # 784 graph nodes
    F_IN = 64
    F_OUT = 32

    key = jax.random.PRNGKey(0)
    k_x, k_w, k_a = jax.random.split(key, 3)

    x = jax.random.normal(k_x, (N, F_IN), dtype=jnp.float32)
    # Deterministic Glorot-style init (module leaves weight uninitialized).
    weight = jax.random.uniform(
        k_w, (F_IN, F_OUT), dtype=jnp.float32, minval=-1.0, maxval=1.0
    ) / jnp.sqrt(F_IN)

    # Sparse, banded 0/1 adjacency (pixel-neighborhood-like): edges only within
    # |i - j| <= 150, ~10% density inside the band -> genuinely block sparse.
    ii = jnp.arange(N)[:, None]
    jj = jnp.arange(N)[None, :]
    band = jnp.abs(ii - jj) <= 150
    rnd = jax.random.uniform(k_a, (N, N)) < 0.10
    adj = (band & rnd).astype(jnp.float32)

    out = graph_convolution(x, adj, weight, tm=512, tk=512)
    out = jax.block_until_ready(out)
    assert out.shape == (N, F_OUT)
    assert out.dtype == jnp.float32

    # Reference that emulates the kernel's bf16 MXU inputs and bf16 support
    # cache (adj is 0/1 -> exact), so the comparison isolates kernel logic.
    xb = x.astype(jnp.bfloat16).astype(jnp.float32)
    wb = weight.astype(jnp.bfloat16).astype(jnp.float32)
    support_ref = jnp.dot(xb, wb, precision=jax.lax.Precision.HIGHEST)
    support_ref = support_ref.astype(jnp.bfloat16).astype(jnp.float32)
    ref = jnp.dot(adj, support_ref, precision=jax.lax.Precision.HIGHEST)
    assert jnp.allclose(out, ref, atol=2e-2, rtol=2e-2), float(
        jnp.max(jnp.abs(out - ref)))

    print("KERNEL_OK")
</pallas_src>

<mosaic_0001>
module attributes {stable_mosaic.version = 11 : i64} {
  func.func @kernel(%arg0: i32, %arg1: memref<6xi32, #tpu.memory_space<smem>>, %arg2: memref<6xi32, #tpu.memory_space<smem>>, %arg3: memref<6xi32, #tpu.memory_space<smem>>, %arg4: memref<6xi32, #tpu.memory_space<smem>>, %arg5: memref<512x128xbf16, #tpu.memory_space<vmem>>, %arg6: memref<128x128xbf16, #tpu.memory_space<vmem>>, %arg7: memref<512x512xi8, #tpu.memory_space<vmem>>, %arg8: memref<512x128xf32, #tpu.memory_space<vmem>>, %arg9: memref<2x512x128xbf16, #tpu.memory_space<vmem>>) attributes {dimension_semantics = [#tpu.dimension_semantics<arbitrary>], iteration_bounds = array<i64: 6>, scalar_prefetch = 4 : i64, scratch_operands = 1 : i64, tpu.core_type = #tpu.core_type<tc>, window_params = [{transform_indices = @transform_0, window_bounds = array<i64: 512, 128>}, {pipeline_mode = #tpu.pipeline_mode<synchronous>, transform_indices = @transform_1, window_bounds = array<i64: 128, 128>}, {transform_indices = @transform_2, window_bounds = array<i64: 512, 512>}, {transform_indices = @transform_3, window_bounds = array<i64: 512, 128>}]} {
    %c2_i32 = arith.constant 2 : i32
    %0 = arith.cmpi slt, %arg0, %c2_i32 : i32
    %1 = arith.extui %0 : i1 to i32
    %c0_i32 = arith.constant 0 : i32
    %2 = arith.cmpi ne, %1, %c0_i32 : i32
    scf.if %2 {
      %c0 = arith.constant 0 : index
      %c0_3 = arith.constant 0 : index
      %12 = vector.load %arg5[%c0, %c0_3] : memref<512x128xbf16, #tpu.memory_space<vmem>>, vector<512x128xbf16>
      %c0_4 = arith.constant 0 : index
      %c0_5 = arith.constant 0 : index
      %13 = vector.load %arg6[%c0_4, %c0_5] : memref<128x128xbf16, #tpu.memory_space<vmem>>, vector<128x128xbf16>
      %cst = arith.constant dense<0.000000e+00> : vector<512x128xf32>
      %14 = tpu.matmul %12, %13, %cst {dimension_numbers = #tpu.dot_dimension_numbers<[1], [0], [0], [1], [0, 0, 1, 1], [], []>} : vector<512x128xbf16>, vector<128x128xbf16>, vector<512x128xf32> -> vector<512x128xf32>
      %15 = arith.truncf %14 : vector<512x128xf32> to vector<512x128xbf16>
      %16 = arith.index_cast %arg0 : i32 to index
      %c0_6 = arith.constant 0 : index
      %c0_7 = arith.constant 0 : index
      %17 = vector.load %arg9[%16, %c0_6, %c0_7] : memref<2x512x128xbf16, #tpu.memory_space<vmem>>, vector<1x512x128xbf16>
      %18 = vector.shape_cast %17 : vector<1x512x128xbf16> to vector<512x128xbf16>
      %19 = vector.shape_cast %15 : vector<512x128xbf16> to vector<1x512x128xbf16>
      tpu.vector_store %arg9[%16, %c0_6, %c0_7], %19 {strides = array<i32>} : memref<2x512x128xbf16, #tpu.memory_space<vmem>>, vector<1x512x128xbf16>,
    } else {
    }
    %c2_i32_0 = arith.constant 2 : i32
    %3 = arith.cmpi sge, %arg0, %c2_i32_0 : i32
    %4 = arith.index_cast %arg0 : i32 to index
    %5 = memref.load %arg4[%4] : memref<6xi32, #tpu.memory_space<smem>>
    %c1_i32 = arith.constant 1 : i32
    %6 = arith.cmpi eq, %5, %c1_i32 : i32
    %7 = arith.andi %3, %6 : i1
    %8 = arith.extui %7 : i1 to i32
    %c0_i32_1 = arith.constant 0 : i32
    %9 = arith.cmpi ne, %8, %c0_i32_1 : i32
    scf.if %9 {
      %cst = arith.constant 0.000000e+00 : f32
      %12 = vector.broadcast %cst : f32 to vector<512x128xf32>
      %c0 = arith.constant 0 : index
      %c0_3 = arith.constant 0 : index
      %13 = vector.load %arg8[%c0, %c0_3] : memref<512x128xf32, #tpu.memory_space<vmem>>, vector<512x128xf32>
      tpu.vector_store %arg8[%c0, %c0_3], %12 {strides = array<i32>} : memref<512x128xf32, #tpu.memory_space<vmem>>, vector<512x128xf32>,
    } else {
    }
    %10 = arith.extui %3 : i1 to i32
    %c0_i32_2 = arith.constant 0 : i32
    %11 = arith.cmpi ne, %10, %c0_i32_2 : i32
    scf.if %11 {
      %12 = arith.index_cast %arg0 : i32 to index
      %13 = memref.load %arg3[%12] : memref<6xi32, #tpu.memory_space<smem>>
      %c0 = arith.constant 0 : index
      %c0_3 = arith.constant 0 : index
      %14 = vector.load %arg7[%c0, %c0_3] : memref<512x512xi8, #tpu.memory_space<vmem>>, vector<512x512xi8>
      %15 = arith.sitofp %14 : vector<512x512xi8> to vector<512x512xbf16>
      %c0_4 = arith.constant 0 : index
      %c0_5 = arith.constant 0 : index
      %16 = vector.load %arg8[%c0_4, %c0_5] : memref<512x128xf32, #tpu.memory_space<vmem>>, vector<512x128xf32>
      %17 = arith.index_cast %13 : i32 to index
      %c0_6 = arith.constant 0 : index
      %c0_7 = arith.constant 0 : index
      %18 = vector.load %arg9[%17, %c0_6, %c0_7] : memref<2x512x128xbf16, #tpu.memory_space<vmem>>, vector<1x512x128xbf16>
      %19 = vector.shape_cast %18 : vector<1x512x128xbf16> to vector<512x128xbf16>
      %cst = arith.constant dense<0.000000e+00> : vector<512x128xf32>
      %20 = tpu.matmul %15, %19, %cst {dimension_numbers = #tpu.dot_dimension_numbers<[1], [0], [0], [1], [0, 0, 1, 1], [], []>} : vector<512x512xbf16>, vector<512x128xbf16>, vector<512x128xf32> -> vector<512x128xf32>
      %21 = arith.addf %16, %20 : vector<512x128xf32>
      %c0_8 = arith.constant 0 : index
      %c0_9 = arith.constant 0 : index
      %22 = vector.load %arg8[%c0_8, %c0_9] : memref<512x128xf32, #tpu.memory_space<vmem>>, vector<512x128xf32>
      tpu.vector_store %arg8[%c0_8, %c0_9], %21 {strides = array<i32>} : memref<512x128xf32, #tpu.memory_space<vmem>>, vector<512x128xf32>,
    } else {
    }
    return
  }
  func.func @transform_0(%arg0: i32, %arg1: memref<6xi32, #tpu.memory_space<smem>>, %arg2: memref<6xi32, #tpu.memory_space<smem>>, %arg3: memref<6xi32, #tpu.memory_space<smem>>, %arg4: memref<6xi32, #tpu.memory_space<smem>>) -> (i32, i32) {
    %0 = arith.index_cast %arg0 : i32 to index
    %1 = memref.load %arg1[%0] : memref<6xi32, #tpu.memory_space<smem>>
    %c0_i32 = arith.constant 0 : i32
    %c0_i32_0 = arith.constant 0 : i32
    return %1, %c0_i32 : i32, i32
  }
  func.func @transform_1(%arg0: i32, %arg1: memref<6xi32, #tpu.memory_space<smem>>, %arg2: memref<6xi32, #tpu.memory_space<smem>>, %arg3: memref<6xi32, #tpu.memory_space<smem>>, %arg4: memref<6xi32, #tpu.memory_space<smem>>) -> (i32, i32) {
    %c0_i32 = arith.constant 0 : i32
    %c0_i32_0 = arith.constant 0 : i32
    %c0_i32_1 = arith.constant 0 : i32
    return %c0_i32, %c0_i32_0 : i32, i32
  }
  func.func @transform_2(%arg0: i32, %arg1: memref<6xi32, #tpu.memory_space<smem>>, %arg2: memref<6xi32, #tpu.memory_space<smem>>, %arg3: memref<6xi32, #tpu.memory_space<smem>>, %arg4: memref<6xi32, #tpu.memory_space<smem>>) -> (i32, i32) {
    %0 = arith.index_cast %arg0 : i32 to index
    %1 = memref.load %arg2[%0] : memref<6xi32, #tpu.memory_space<smem>>
    %2 = arith.index_cast %arg0 : i32 to index
    %3 = memref.load %arg3[%2] : memref<6xi32, #tpu.memory_space<smem>>
    %c0_i32 = arith.constant 0 : i32
    return %1, %3 : i32, i32
  }
  func.func @transform_3(%arg0: i32, %arg1: memref<6xi32, #tpu.memory_space<smem>>, %arg2: memref<6xi32, #tpu.memory_space<smem>>, %arg3: memref<6xi32, #tpu.memory_space<smem>>, %arg4: memref<6xi32, #tpu.memory_space<smem>>) -> (i32, i32) {
    %0 = arith.index_cast %arg0 : i32 to index
    %1 = memref.load %arg2[%0] : memref<6xi32, #tpu.memory_space<smem>>
    %c0_i32 = arith.constant 0 : i32
    %c0_i32_0 = arith.constant 0 : i32
    return %1, %c0_i32 : i32, i32
  }
}

</mosaic_0001>

<llo_original>
// kernel: tpu_custom_call.1
$region0: #{tpu_custom_call.1}
  #allocation0 [shape = 'u32[]', space=smem, size = 0x4, offset = 0x4, fixed_abs, tag = 'smem constant byte address 0x4 - core index']
  #allocation1 [shape = 'u32[72,128]{1,0:T(1,128)}', space=vmem, size = 0x9000, scoped, tag = 'internal scratch']
  #allocation2 [shape = 'bf16[2,512,128]{2,1,0:T(8,128)(2,1)}', space=vmem, size = 0x40000, scoped, tag = 'scratch operand']
  #allocation3 [shape = 's32[1]{0}', space=sflag, size = 0x4, scoped, tag = 'scoped memory for tpu_custom_call.1']
  #allocation4 [shape = 'u8[512]{0}', space=smem, size = 0x200, scoped, tag = 'prefetched SMEM operand 0']
  #allocation5 [shape = 'u8[512]{0}', space=smem, size = 0x200, scoped, tag = 'prefetched SMEM operand 1']
  #allocation6 [shape = 'u8[512]{0}', space=smem, size = 0x200, scoped, tag = 'prefetched SMEM operand 2']
  #allocation7 [shape = 'u8[512]{0}', space=smem, size = 0x200, scoped, tag = 'prefetched SMEM operand 3']
  %s0 = inlined_call_operand.hbm [shape: s32[6], index: 0, kind: input, shape index: {}]
  %s1 = inlined_call_operand.hbm [shape: s32[6], index: 1, kind: input, shape index: {}]
  %s2 = inlined_call_operand.vmem [shape: s32[6], index: 2, kind: input, shape index: {}]
  %s3 = inlined_call_operand.vmem [shape: s32[6], index: 3, kind: input, shape index: {}]
  %s4 = inlined_call_operand.hbm [shape: bf16[1024,128], index: 4, kind: input, shape index: {}]
  %s5 = inlined_call_operand.hbm [shape: bf16[128,128], index: 5, kind: input, shape index: {}]
  %s6 = inlined_call_operand.hbm [shape: s8[1024,1024], index: 6, kind: input, shape index: {}]
  %s7 = inlined_call_operand.hbm [shape: f32[1024,128], index: 7, kind: output, shape index: {}]
  %s8 = sld [smem:[#allocation0]]
  $region69: #{tpu_custom_call.1} parent=0
    _
  %s10 = ssub.s32 1, %s8
  %s11 = scalar_select 0, %s10, %s8
  %s13 = sshll.u32 %s0, 4
  %s14 = int_to_ptr.hbm [resolvable:$true] %s13
  %16 = dma.hbm_to_smem %s14, 16, [#allocation4], [#allocation3]
  %s18 = sshll.u32 %s1, 4
  %s19 = int_to_ptr.hbm [resolvable:$true] %s18
  %21 = dma.hbm_to_smem %s19, 16, [#allocation5], [#allocation3]
  %s23 = sshll.u32 %s2, 4
  %s24 = int_to_ptr.vmem [resolvable:$true] %s23
  %26 = dma.vmem_to_smem %s24, 16, [#allocation6], [#allocation3]
  %s28 = sshll.u32 %s3, 4
  %s29 = int_to_ptr.vmem [resolvable:$true] %s28
  %31 = dma.vmem_to_smem %s29, 16, [#allocation7], [#allocation3]
  %33 = dma.done [#allocation3], 64
  %34 = sfence
  $region1: #{tpu_custom_call.1} parent=0
    #allocation8 [shape = 'u8[262144]{0}', space=vmem, size = 0x40000, scoped, tag = 'input window, operand 4']
    #allocation9 [shape = 's32[2]{0}', space=sflag, size = 0x8, scoped, tag = 'scoped memory for tpu_custom_call.1']
    #allocation10 [shape = 's32[2]{0}', space=sflag, size = 0x8, scoped, tag = 'scoped memory for tpu_custom_call.1']
    #allocation11 [shape = 'u8[32768]{0}', space=vmem, size = 0x8000, scoped, tag = 'input window, operand 5, single buffered']
    #allocation12 [shape = 's32[1]{0}', space=sflag, size = 0x4, scoped, tag = 'scoped memory for tpu_custom_call.1']
    #allocation13 [shape = 'u8[524288]{0}', space=vmem, size = 0x80000, scoped, tag = 'input window, operand 6']
    #allocation14 [shape = 'u8[524288]{0}', space=vmem, size = 0x80000, scoped, tag = 'output window, operand 0']
    %35 = vsyncpa [#allocation9], 0
    %s36 = scalar_lea.sflag [#allocation9], 1
    %37 = vsyncpa %s36, 0
    %38 = vsyncpa [#allocation12], 0
    %39 = vsyncpa [#allocation10], 0
    %s40 = scalar_lea.sflag [#allocation10], 1
    %41 = vsyncpa %s40, 0
    loop: start=0, step=1, limit=8
    $region2: #{tpu_custom_call.1} parent=1 // loop_pre_header
      _
    $region3: #{tpu_custom_call.1} parent=1 // loop_header
      %s43 = sphi 0, %s47
      %p44 = scmp.ge.s32.totalorder %s43, 8
      %s55 = sphi 0, %s57
      %s58 = sphi 0, %s55
      %s59 = sphi 0, %s58
      %s75 = sphi 0, %s59
      %s79 = sphi 0, %s79
      %s81 = sphi 0, %s79
      %s82 = sphi 0, %s81
      %s96 = sphi 0, %s82
      %s108 = sphi 0, %s110
      %s111 = sphi 0, %s108
      %s112 = sphi 0, %s111
      %s128 = sphi 0, %s112
      %s136 = sphi 0, %s138
      %s139 = sphi 0, %s136
      %s140 = sphi 0, %s139
      %s156 = sphi 0, %s140
    $region4: #{tpu_custom_call.1} parent=1 // loop_header_branch
      %46 = sbr.rel (%p44) target = $region8
    $region5: #{tpu_custom_call.1} parent=1 // loop_body
      %s48 = ssub.s32 %s43, 1
      %s49 = ssub.s32 %s43, 2
      %s50 = sadd.s32 %s43, 1
      %s51 = sld [smem:[#allocation4 + %s43]]
      %s52 = sld [smem:[#allocation4 + %s50]]
      %s53 = ssub.s32 %s51, %s52
      %p54 = scmp.eq.s32.totalorder %s53, 0
      %s56 = sadd.s32 %s55, 1
      %s57 = scalar_select %p54, %s55, %s56
      %p60 = pneg %p54
      %p61 = scmp.eq.s32.totalorder %s43, 5
      %p62 = por %p60, %p61
      %p63 = scmp.ne.s32.totalorder %s55, %s58
      %p64 = scmp.eq.s32.totalorder %s43, 0
      %p65 = por %p63, %p64
      %p66 = scmp.ne.s32.totalorder %s55, %s58
      %p67 = scmp.eq.s32.totalorder %s48, 5
      %p68 = por %p66, %p67
      %p69 = scmp.ne.s32.totalorder %s58, %s59
      %p70 = scmp.eq.s32.totalorder %s48, 0
      %p71 = por %p69, %p70
      %p72 = scmp.ne.s32.totalorder %s58, %s59
      %p73 = scmp.eq.s32.totalorder %s49, 5
      %p74 = por %p72, %p73
      %p76 = scmp.ne.s32.totalorder %s59, %s75
      %p77 = scmp.eq.s32.totalorder %s49, 0
      %p78 = por %p76, %p77
      %s80 = sadd.s32 %s79, 1
      %p83 = scmp.eq.s32.totalorder %s43, 5
      %p84 = scmp.ne.s32.totalorder %s79, %s81
      %p85 = scmp.eq.s32.totalorder %s43, 0
      %p86 = por %p84, %p85
      %p87 = scmp.ne.s32.totalorder %s79, %s81
      %p88 = scmp.eq.s32.totalorder %s48, 5
      %p89 = por %p87, %p88
      %p90 = scmp.ne.s32.totalorder %s81, %s82
      %p91 = scmp.eq.s32.totalorder %s48, 0
      %p92 = por %p90, %p91
      %p93 = scmp.ne.s32.totalorder %s81, %s82
      %p94 = scmp.eq.s32.totalorder %s49, 5
      %p95 = por %p93, %p94
      %p97 = scmp.ne.s32.totalorder %s82, %s96
      %p98 = scmp.eq.s32.totalorder %s49, 0
      %p99 = por %p97, %p98
      %s100 = sld [smem:[#allocation5 + %s43]]
      %s101 = sld [smem:[#allocation6 + %s43]]
      %s102 = sld [smem:[#allocation5 + %s50]]
      %s103 = sld [smem:[#allocation6 + %s50]]
      %s104 = ssub.s32 %s100, %s102
      %s105 = ssub.s32 %s101, %s103
      %s106 = sor.u32 %s104, %s105
      %p107 = scmp.eq.s32.totalorder %s106, 0
      %s109 = sadd.s32 %s108, 1
      %s110 = scalar_select %p107, %s108, %s109
      %p113 = pneg %p107
      %p114 = scmp.eq.s32.totalorder %s43, 5
      %p115 = por %p113, %p114
      %p116 = scmp.ne.s32.totalorder %s108, %s111
      %p117 = scmp.eq.s32.totalorder %s43, 0
      %p118 = por %p116, %p117
      %p119 = scmp.ne.s32.totalorder %s108, %s111
      %p120 = scmp.eq.s32.totalorder %s48, 5
      %p121 = por %p119, %p120
      %p122 = scmp.ne.s32.totalorder %s111, %s112
      %p123 = scmp.eq.s32.totalorder %s48, 0
      %p124 = por %p122, %p123
      %p125 = scmp.ne.s32.totalorder %s111, %s112
      %p126 = scmp.eq.s32.totalorder %s49, 5
      %p127 = por %p125, %p126
      %p129 = scmp.ne.s32.totalorder %s112, %s128
      %p130 = scmp.eq.s32.totalorder %s49, 0
      %p131 = por %p129, %p130
      %s132 = sld [smem:[#allocation5 + %s43]]
      %s133 = sld [smem:[#allocation5 + %s50]]
      %s134 = ssub.s32 %s132, %s133
      %p135 = scmp.eq.s32.totalorder %s134, 0
      %s137 = sadd.s32 %s136, 1
      %s138 = scalar_select %p135, %s136, %s137
      %p141 = pneg %p135
      %p142 = scmp.eq.s32.totalorder %s43, 5
      %p143 = por %p141, %p142
      %p144 = scmp.ne.s32.totalorder %s136, %s139
      %p145 = scmp.eq.s32.totalorder %s43, 0
      %p146 = por %p144, %p145
      %p147 = scmp.ne.s32.totalorder %s136, %s139
      %p148 = scmp.eq.s32.totalorder %s48, 5
      %p149 = por %p147, %p148
      %p150 = scmp.ne.s32.totalorder %s139, %s140
      %p151 = scmp.eq.s32.totalorder %s48, 0
      %p152 = por %p150, %p151
      %p153 = scmp.ne.s32.totalorder %s139, %s140
      %p154 = scmp.eq.s32.totalorder %s49, 5
      %p155 = por %p153, %p154
      %p157 = scmp.ne.s32.totalorder %s140, %s156
      %p158 = scmp.eq.s32.totalorder %s49, 0
      %p159 = por %p157, %p158
      %p160 = scmp.le.s32.totalorder 1, %s43
      %p161 = scmp.lt.s32.totalorder %s43, 7
      %p162 = pnand %p160, %p161
      %p163 = pneg %p162
      // Predicated region
      $region9: #{tpu_custom_call.1} parent=5 // pred_check
        _
      $region10: #{tpu_custom_call.1} parent=5 // pred_check_branch
        %165 = sbr.rel (%p162) target = $region12
      $region11: #{tpu_custom_call.1} parent=5 // pred_region
        %s166 = ssub.s32 %s43, 1
        // Predicated region
        $region13: #{tpu_custom_call.1} parent=11 // pred_check
          %p167 = pneg %p92
        $region14: #{tpu_custom_call.1} parent=11 // pred_check_branch
          %169 = sbr.rel (%p167) target = $region16
        $region15: #{tpu_custom_call.1} parent=11 // pred_region
          %171 = vsyncadd [#allocation12], 0
          %s172 = sshll.u32 %s5, 4
          %s173 = int_to_ptr.hbm [resolvable:$true] %s172
          %s174 = sshll.u32 [#allocation11], 4
          %s175 = int_to_ptr.vmem [resolvable:$true] %s174
          %180 = dma.hbm_to_vmem [thread:$0]  %s173, 1024, %s175, [#allocation12], 64, 64, 4
        $region16: #{tpu_custom_call.1} parent=11 // pred_fallthru
          _
      $region12: #{tpu_custom_call.1} parent=5 // pred_fallthru
        _
      %p181 = scmp.lt.s32.totalorder %s43, 6
      // Predicated region
      $region17: #{tpu_custom_call.1} parent=5 // pred_check
        %p182 = pneg %p181
      $region18: #{tpu_custom_call.1} parent=5 // pred_check_branch
        %184 = sbr.rel (%p182) target = $region20
      $region19: #{tpu_custom_call.1} parent=5 // pred_region
        // Predicated region
        $region21: #{tpu_custom_call.1} parent=19 // pred_check
          %p185 = pneg %p65
        $region22: #{tpu_custom_call.1} parent=19 // pred_check_branch
          %187 = sbr.rel (%p185) target = $region24
        $region23: #{tpu_custom_call.1} parent=19 // pred_region
          %s188 = sand.u32 %s43, 1
          %s189 = scalar_lea.sflag [#allocation9], %s188
          %s190 = sand.u32 %s55, 1
          %s191 = smul.addr %s190, 256
          %s192 = scalar_lea.vmem [#allocation8], %s191
          %s193 = sld [smem:[#allocation4 + %s43]]
          %s194 = smul.u32 64, %s193
          %196 = vsyncadd %s189, 0
          %s197 = smul.addr %s194, 4
          %s198 = scalar_lea.hbm %s4, %s197
          %s199 = sshll.u32 %s198, 4
          %s200 = int_to_ptr.hbm [resolvable:$true] %s199
          %s201 = sshll.u32 %s192, 4
          %s202 = int_to_ptr.vmem [resolvable:$true] %s201
          %207 = dma.hbm_to_vmem [thread:$0]  %s200, 4096, %s202, %s189, 64, 64, 4
        $region24: #{tpu_custom_call.1} parent=19 // pred_fallthru
          _
        // Predicated region
        $region25: #{tpu_custom_call.1} parent=19 // pred_check
          %p208 = pneg %p118
        $region26: #{tpu_custom_call.1} parent=19 // pred_check_branch
          %210 = sbr.rel (%p208) target = $region28
        $region27: #{tpu_custom_call.1} parent=19 // pred_region
          %s211 = sand.u32 %s43, 1
          %s212 = scalar_lea.sflag [#allocation9], %s211
          %s213 = sand.u32 %s108, 1
          %s214 = smul.addr %s213, 512
          %s215 = scalar_lea.vmem [#allocation13], %s214
          %s216 = sld [smem:[#allocation5 + %s43]]
          %s217 = sld [smem:[#allocation6 + %s43]]
          %s218 = smul.u32 16, %s216
          %s219 = smul.u32 4, %s217
          %221 = vsyncadd %s212, 0
          %s222 = smul.addr %s218, 8
          %s223 = sadd.s32 %s219, %s222
          %s224 = smul.addr %s223, 8
          %s225 = scalar_lea.hbm %s6, %s224
          %s226 = sshll.u32 %s225, 4
          %s227 = int_to_ptr.hbm [resolvable:$true] %s226
          %s228 = sshll.u32 %s215, 4
          %s229 = int_to_ptr.vmem [resolvable:$true] %s228
          %234 = dma.hbm_to_vmem [thread:$0]  %s227, 8192, %s229, %s212, 1024, 512, 32
        $region28: #{tpu_custom_call.1} parent=19 // pred_fallthru
          _
      $region20: #{tpu_custom_call.1} parent=5 // pred_fallthru
        _
      %p235 = scmp.le.s32.totalorder 1, %s43
      %p236 = scmp.lt.s32.totalorder %s43, 7
      %p237 = pnand %p235, %p236
      %p238 = pneg %p237
      // Predicated region
      $region29: #{tpu_custom_call.1} parent=5 // pred_check
        _
      $region30: #{tpu_custom_call.1} parent=5 // pred_check_branch
        %240 = sbr.rel (%p237) target = $region32
      $region31: #{tpu_custom_call.1} parent=5 // pred_region
        %s241 = ssub.s32 %s43, 1
        %s242 = sand.u32 %s48, 1
        %s243 = scalar_lea.sflag [#allocation9], %s242
        %s244 = sand.u32 %s58, 1
        %s245 = smul.addr %s244, 256
        %s246 = scalar_lea.vmem [#allocation8], %s245
        // Predicated region
        $region33: #{tpu_custom_call.1} parent=31 // pred_check
          %p247 = pneg %p71
        $region34: #{tpu_custom_call.1} parent=31 // pred_check_branch
          %249 = sbr.rel (%p247) target = $region36
        $region35: #{tpu_custom_call.1} parent=31 // pred_region
          %251 = dma.done %s243, 4096
        $region36: #{tpu_custom_call.1} parent=31 // pred_fallthru
          _
        // Predicated region
        $region37: #{tpu_custom_call.1} parent=31 // pred_check
          %p252 = pneg %p92
        $region38: #{tpu_custom_call.1} parent=31 // pred_check_branch
          %254 = sbr.rel (%p252) target = $region40
        $region39: #{tpu_custom_call.1} parent=31 // pred_region
          %256 = dma.done [#allocation12], 1024
        $region40: #{tpu_custom_call.1} parent=31 // pred_fallthru
          _
        %s257 = sand.u32 %s48, 1
        %s258 = scalar_lea.sflag [#allocation9], %s257
        %s259 = sand.u32 %s111, 1
        %s260 = smul.addr %s259, 512
        %s261 = scalar_lea.vmem [#allocation13], %s260
        // Predicated region
        $region41: #{tpu_custom_call.1} parent=31 // pred_check
          %p262 = pneg %p124
        $region42: #{tpu_custom_call.1} parent=31 // pred_check_branch
          %264 = sbr.rel (%p262) target = $region44
        $region43: #{tpu_custom_call.1} parent=31 // pred_region
          %266 = dma.done %s258, 8192
        $region44: #{tpu_custom_call.1} parent=31 // pred_fallthru
          _
        %s267 = sand.u32 %s48, 1
        %s268 = scalar_lea.sflag [#allocation9], %s267
        %s269 = sand.u32 %s58, 1
        %s270 = smul.addr %s269, 256
        %s271 = scalar_lea.vmem [#allocation8], %s270
        %p272 = pneg %p71
        %p273 = pneg %p68
        %p274 = pneg %p92
        %p275 = pneg %p89
        %s276 = sand.u32 %s48, 1
        %s277 = scalar_lea.sflag [#allocation9], %s276
        %s278 = sand.u32 %s111, 1
        %s279 = smul.addr %s278, 512
        %s280 = scalar_lea.vmem [#allocation13], %s279
        %p281 = pneg %p124
        %p282 = pneg %p121
        %p283 = pneg %p152
        %p284 = pneg %p149
        %s285 = sand.u32 %s139, 1
        %s286 = scalar_lea.sflag [#allocation10], %s285
        %s287 = sand.u32 %s139, 1
        %s288 = smul.addr %s287, 512
        %s289 = scalar_lea.vmem [#allocation14], %s288
        %s290 = sld [smem:[#allocation4 + %s48]]
        %s291 = smul.u32 64, %s290
        %s292 = sld [smem:[#allocation5 + %s48]]
        %s293 = sld [smem:[#allocation6 + %s48]]
        %s294 = smul.u32 16, %s292
        %s295 = smul.u32 4, %s293
        %s296 = sld [smem:[#allocation5 + %s48]]
        %s297 = smul.u32 64, %s296
        %p298 = scmp.lt.s32.totalorder %s48, 2
        // Predicated region
        $region45: #{tpu_custom_call.1} parent=31 // pred_check
          %p299 = pneg %p298
        $region46: #{tpu_custom_call.1} parent=31 // pred_check_branch
          %301 = sbr.rel (%p299) target = $region48
        $region47: #{tpu_custom_call.1} parent=31 // pred_region
          %v302 = vld [vmem:[%s246] sm:$0xf]
          %v303 = vld [vmem:[%s246 + $0x4] sm:$0xf]
          %v304 = vld [vmem:[%s246 + $0x8] sm:$0xf]
          %v305 = vld [vmem:[%s246 + $0xc] sm:$0xf]
          %v306 = vld [vmem:[%s246 + $0x10] sm:$0xf]
          %v307 = vld [vmem:[%s246 + $0x14] sm:$0xf]
          %v308 = vld [vmem:[%s246 + $0x18] sm:$0xf]
          %v309 = vld [vmem:[%s246 + $0x1c] sm:$0xf]
          %v310 = vld [vmem:[%s246 + $0x20] sm:$0xf]
          %v311 = vld [vmem:[%s246 + $0x24] sm:$0xf]
          %v312 = vld [vmem:[%s246 + $0x28] sm:$0xf]
          %v313 = vld [vmem:[%s246 + $0x2c] sm:$0xf]
          %v314 = vld [vmem:[%s246 + $0x30] sm:$0xf]
          %v315 = vld [vmem:[%s246 + $0x34] sm:$0xf]
          %v316 = vld [vmem:[%s246 + $0x38] sm:$0xf]
          %v317 = vld [vmem:[%s246 + $0x3c] sm:$0xf]
          %v318 = vld [vmem:[%s246 + $0x40] sm:$0xf]
          %v319 = vld [vmem:[%s246 + $0x44] sm:$0xf]
          %v320 = vld [vmem:[%s246 + $0x48] sm:$0xf]
          %v321 = vld [vmem:[%s246 + $0x4c] sm:$0xf]
          %v322 = vld [vmem:[%s246 + $0x50] sm:$0xf]
          %v323 = vld [vmem:[%s246 + $0x54] sm:$0xf]
          %v324 = vld [vmem:[%s246 + $0x58] sm:$0xf]
          %v325 = vld [vmem:[%s246 + $0x5c] sm:$0xf]
          %v326 = vld [vmem:[%s246 + $0x60] sm:$0xf]
          %v327 = vld [vmem:[%s246 + $0x64] sm:$0xf]
          %v328 = vld [vmem:[%s246 + $0x68] sm:$0xf]
          %v329 = vld [vmem:[%s246 + $0x6c] sm:$0xf]
          %v330 = vld [vmem:[%s246 + $0x70] sm:$0xf]
          %v331 = vld [vmem:[%s246 + $0x74] sm:$0xf]
          %v332 = vld [vmem:[%s246 + $0x78] sm:$0xf]
          %v333 = vld [vmem:[%s246 + $0x7c] sm:$0xf]
          %v334 = vld [vmem:[%s246 + $0x80] sm:$0xf]
          %v335 = vld [vmem:[%s246 + $0x84] sm:$0xf]
          %v336 = vld [vmem:[%s246 + $0x88] sm:$0xf]
          %v337 = vld [vmem:[%s246 + $0x8c] sm:$0xf]
          %v338 = vld [vmem:[%s246 + $0x90] sm:$0xf]
          %v339 = vld [vmem:[%s246 + $0x94] sm:$0xf]
          %v340 = vld [vmem:[%s246 + $0x98] sm:$0xf]
          %v341 = vld [vmem:[%s246 + $0x9c] sm:$0xf]
          %v342 = vld [vmem:[%s246 + $0xa0] sm:$0xf]
          %v343 = vld [vmem:[%s246 + $0xa4] sm:$0xf]
          %v344 = vld [vmem:[%s246 + $0xa8] sm:$0xf]
          %v345 = vld [vmem:[%s246 + $0xac] sm:$0xf]
          %v346 = vld [vmem:[%s246 + $0xb0] sm:$0xf]
          %v347 = vld [vmem:[%s246 + $0xb4] sm:$0xf]
          %v348 = vld [vmem:[%s246 + $0xb8] sm:$0xf]
          %v349 = vld [vmem:[%s246 + $0xbc] sm:$0xf]
          %v350 = vld [vmem:[%s246 + $0xc0] sm:$0xf]
          %v351 = vld [vmem:[%s246 + $0xc4] sm:$0xf]
          %v352 = vld [vmem:[%s246 + $0xc8] sm:$0xf]
          %v353 = vld [vmem:[%s246 + $0xcc] sm:$0xf]
          %v354 = vld [vmem:[%s246 + $0xd0] sm:$0xf]
          %v355 = vld [vmem:[%s246 + $0xd4] sm:$0xf]
          %v356 = vld [vmem:[%s246 + $0xd8] sm:$0xf]
          %v357 = vld [vmem:[%s246 + $0xdc] sm:$0xf]
          %v358 = vld [vmem:[%s246 + $0xe0] sm:$0xf]
          %v359 = vld [vmem:[%s246 + $0xe4] sm:$0xf]
          %v360 = vld [vmem:[%s246 + $0xe8] sm:$0xf]
          %v361 = vld [vmem:[%s246 + $0xec] sm:$0xf]
          %v362 = vld [vmem:[%s246 + $0xf0] sm:$0xf]
          %v363 = vld [vmem:[%s246 + $0xf4] sm:$0xf]
          %v364 = vld [vmem:[%s246 + $0xf8] sm:$0xf]
          %v365 = vld [vmem:[%s246 + $0xfc] sm:$0xf]
          %v366 = vld [vmem:[#allocation11] sm:$0xf]
          %v367 = vld [vmem:[#allocation11 + $0x4] sm:$0xf]
          %v368 = vld [vmem:[#allocation11 + $0x8] sm:$0xf]
          %v369 = vld [vmem:[#allocation11 + $0xc] sm:$0xf]
          %v370 = vld [vmem:[#allocation11 + $0x10] sm:$0xf]
          %v371 = vld [vmem:[#allocation11 + $0x14] sm:$0xf]
          %v372 = vld [vmem:[#allocation11 + $0x18] sm:$0xf]
          %v373 = vld [vmem:[#allocation11 + $0x1c] sm:$0xf]
          %v374 = vld [vmem:[#allocation11 + $0x20] sm:$0xf]
          %v375 = vld [vmem:[#allocation11 + $0x24] sm:$0xf]
          %v376 = vld [vmem:[#allocation11 + $0x28] sm:$0xf]
          %v377 = vld [vmem:[#allocation11 + $0x2c] sm:$0xf]
          %v378 = vld [vmem:[#allocation11 + $0x30] sm:$0xf]
          %v379 = vld [vmem:[#allocation11 + $0x34] sm:$0xf]
          %v380 = vld [vmem:[#allocation11 + $0x38] sm:$0xf]
          %v381 = vld [vmem:[#allocation11 + $0x3c] sm:$0xf]
          %v446 = vunpack.c.l.b16 %v302
          %v447 = vunpack.c.l.b16 %v303
          %v448 = vunpack.c.l.b16 %v304
          %v449 = vunpack.c.l.b16 %v305
          %v450 = vunpack.c.l.b16 %v306
          %v451 = vunpack.c.l.b16 %v307
          %v452 = vunpack.c.l.b16 %v308
          %v453 = vunpack.c.l.b16 %v309
          %v454 = vunpack.c.l.b16 %v310
          %v455 = vunpack.c.l.b16 %v311
          %v456 = vunpack.c.l.b16 %v312
          %v457 = vunpack.c.l.b16 %v313
          %v458 = vunpack.c.l.b16 %v314
          %v459 = vunpack.c.l.b16 %v315
          %v460 = vunpack.c.l.b16 %v316
          %v461 = vunpack.c.l.b16 %v317
          %v462 = vunpack.c.l.b16 %v318
          %v463 = vunpack.c.l.b16 %v319
          %v464 = vunpack.c.l.b16 %v320
          %v465 = vunpack.c.l.b16 %v321
          %v466 = vunpack.c.l.b16 %v322
          %v467 = vunpack.c.l.b16 %v323
          %v468 = vunpack.c.l.b16 %v324
          %v469 = vunpack.c.l.b16 %v325
          %v470 = vunpack.c.l.b16 %v326
          %v471 = vunpack.c.l.b16 %v327
          %v472 = vunpack.c.l.b16 %v328
          %v473 = vunpack.c.l.b16 %v329
          %v474 = vunpack.c.l.b16 %v330
          %v475 = vunpack.c.l.b16 %v331
          %v476 = vunpack.c.l.b16 %v332
          %v477 = vunpack.c.l.b16 %v333
          %v478 = vunpack.c.l.b16 %v334
          %v479 = vunpack.c.l.b16 %v335
          %v480 = vunpack.c.l.b16 %v336
          %v481 = vunpack.c.l.b16 %v337
          %v482 = vunpack.c.l.b16 %v338
          %v483 = vunpack.c.l.b16 %v339
          %v484 = vunpack.c.l.b16 %v340
          %v485 = vunpack.c.l.b16 %v341
          %v486 = vunpack.c.l.b16 %v342
          %v487 = vunpack.c.l.b16 %v343
          %v488 = vunpack.c.l.b16 %v344
          %v489 = vunpack.c.l.b16 %v345
          %v490 = vunpack.c.l.b16 %v346
          %v491 = vunpack.c.l.b16 %v347
          %v492 = vunpack.c.l.b16 %v348
          %v493 = vunpack.c.l.b16 %v349
          %v494 = vunpack.c.l.b16 %v350
          %v495 = vunpack.c.l.b16 %v351
          %v496 = vunpack.c.l.b16 %v352
          %v497 = vunpack.c.l.b16 %v353
          %v498 = vunpack.c.l.b16 %v354
          %v499 = vunpack.c.l.b16 %v355
          %v500 = vunpack.c.l.b16 %v356
          %v501 = vunpack.c.l.b16 %v357
          %v502 = vunpack.c.l.b16 %v358
          %v503 = vunpack.c.l.b16 %v359
          %v504 = vunpack.c.l.b16 %v360
          %v505 = vunpack.c.l.b16 %v361
          %v506 = vunpack.c.l.b16 %v362
          %v507 = vunpack.c.l.b16 %v363
          %v508 = vunpack.c.l.b16 %v364
          %v509 = vunpack.c.l.b16 %v365
          %v510 = vpack.c.b16 %v447, %v446
          %v511 = vpack.c.b16 %v449, %v448
          %v512 = vpack.c.b16 %v451, %v450
          %v513 = vpack.c.b16 %v453, %v452
          %v514 = vpack.c.b16 %v455, %v454
          %v515 = vpack.c.b16 %v457, %v456
          %v516 = vpack.c.b16 %v459, %v458
          %v517 = vpack.c.b16 %v461, %v460
          %v518 = vpack.c.b16 %v463, %v462
          %v519 = vpack.c.b16 %v465, %v464
          %v520 = vpack.c.b16 %v467, %v466
          %v521 = vpack.c.b16 %v469, %v468
          %v522 = vpack.c.b16 %v471, %v470
          %v523 = vpack.c.b16 %v473, %v472
          %v524 = vpack.c.b16 %v475, %v474
          %v525 = vpack.c.b16 %v477, %v476
          %v526 = vpack.c.b16 %v479, %v478
          %v527 = vpack.c.b16 %v481, %v480
          %v528 = vpack.c.b16 %v483, %v482
          %v529 = vpack.c.b16 %v485, %v484
          %v530 = vpack.c.b16 %v487, %v486
          %v531 = vpack.c.b16 %v489, %v488
          %v532 = vpack.c.b16 %v491, %v490
          %v533 = vpack.c.b16 %v493, %v492
          %v534 = vpack.c.b16 %v495, %v494
          %v535 = vpack.c.b16 %v497, %v496
          %v536 = vpack.c.b16 %v499, %v498
          %v537 = vpack.c.b16 %v501, %v500
          %v538 = vpack.c.b16 %v503, %v502
          %v539 = vpack.c.b16 %v505, %v504
          %v540 = vpack.c.b16 %v507, %v506
          %v541 = vpack.c.b16 %v509, %v508
          %v590 = vunpack.c.l.b16 %v366
          %v591 = vunpack.c.l.b16 %v367
          %v592 = vunpack.c.l.b16 %v368
          %v593 = vunpack.c.l.b16 %v369
          %v594 = vunpack.c.l.b16 %v370
          %v595 = vunpack.c.l.b16 %v371
          %v596 = vunpack.c.l.b16 %v372
          %v597 = vunpack.c.l.b16 %v373
          %v598 = vunpack.c.l.b16 %v374
          %v599 = vunpack.c.l.b16 %v375
          %v600 = vunpack.c.l.b16 %v376
          %v601 = vunpack.c.l.b16 %v377
          %v602 = vunpack.c.l.b16 %v378
          %v603 = vunpack.c.l.b16 %v379
          %v604 = vunpack.c.l.b16 %v380
          %v605 = vunpack.c.l.b16 %v381
          %v606 = vpack.c.b16 %v591, %v590
          %v607 = vpack.c.b16 %v593, %v592
          %v608 = vpack.c.b16 %v595, %v594
          %v609 = vpack.c.b16 %v597, %v596
          %v610 = vpack.c.b16 %v599, %v598
          %v611 = vpack.c.b16 %v601, %v600
          %v612 = vpack.c.b16 %v603, %v602
          %v613 = vpack.c.b16 %v605, %v604
          %622 = vmatpush.bf16.msra.mxu0 %v613
          %623 = vmatpush.bf16.msra.mxu0 %v612
          %624 = vmatpush.bf16.msra.mxu0 %v611
          %625 = vmatpush.bf16.msra.mxu0 %v610
          %626 = vmatpush.bf16.msra.mxu0 %v609
          %627 = vmatpush.bf16.msra.mxu0 %v608
          %628 = vmatpush.bf16.msra.mxu0 %v607
          %629 = vmatpush.bf16.msra.mxu0 %v606
          %630 = vmatmul.bf16.gmra.mxu0 %v510
          %v631 = vpop.f32.mrf.mxu0
          %v632 = vadd.f32 0.0, %v631
          %v633 = vpop.f32.mrf.mxu0
          %v634 = vadd.f32 0.0, %v633
          %635 = vmatmul.bf16.gmra.mxu0 %v511
          %v636 = vpop.f32.mrf.mxu0
          %v637 = vadd.f32 0.0, %v636
          %v638 = vpop.f32.mrf.mxu0
          %v639 = vadd.f32 0.0, %v638
          %640 = vmatmul.bf16.gmra.mxu0 %v512
          %v641 = vpop.f32.mrf.mxu0
          %v642 = vadd.f32 0.0, %v641
          %v643 = vpop.f32.mrf.mxu0
          %v644 = vadd.f32 0.0, %v643
          %645 = vmatmul.bf16.gmra.mxu0 %v513
          %v646 = vpop.f32.mrf.mxu0
          %v647 = vadd.f32 0.0, %v646
          %v648 = vpop.f32.mrf.mxu0
          %v649 = vadd.f32 0.0, %v648
          %650 = vmatmul.bf16.gmra.mxu0 %v514
          %v651 = vpop.f32.mrf.mxu0
          %v652 = vadd.f32 0.0, %v651
          %v653 = vpop.f32.mrf.mxu0
          %v654 = vadd.f32 0.0, %v653
          %655 = vmatmul.bf16.gmra.mxu0 %v515
          %v656 = vpop.f32.mrf.mxu0
          %v657 = vadd.f32 0.0, %v656
          %v658 = vpop.f32.mrf.mxu0
          %v659 = vadd.f32 0.0, %v658
          %660 = vmatmul.bf16.gmra.mxu0 %v516
          %v661 = vpop.f32.mrf.mxu0
          %v662 = vadd.f32 0.0, %v661
          %v663 = vpop.f32.mrf.mxu0
          %v664 = vadd.f32 0.0, %v663
          %665 = vmatmul.bf16.gmra.mxu0 %v517
          %v666 = vpop.f32.mrf.mxu0
          %v667 = vadd.f32 0.0, %v666
          %v668 = vpop.f32.mrf.mxu0
          %v669 = vadd.f32 0.0, %v668
          %670 = vmatmul.bf16.gmra.mxu0 %v518
          %v671 = vpop.f32.mrf.mxu0
          %v672 = vadd.f32 0.0, %v671
          %v673 = vpop.f32.mrf.mxu0
          %v674 = vadd.f32 0.0, %v673
          %675 = vmatmul.bf16.gmra.mxu0 %v519
          %v676 = vpop.f32.mrf.mxu0
          %v677 = vadd.f32 0.0, %v676
          %v678 = vpop.f32.mrf.mxu0
          %v679 = vadd.f32 0.0, %v678
          %680 = vmatmul.bf16.gmra.mxu0 %v520
          %v681 = vpop.f32.mrf.mxu0
          %v682 = vadd.f32 0.0, %v681
          %v683 = vpop.f32.mrf.mxu0
          %v684 = vadd.f32 0.0, %v683
          %685 = vmatmul.bf16.gmra.mxu0 %v521
          %v686 = vpop.f32.mrf.mxu0
          %v687 = vadd.f32 0.0, %v686
          %v688 = vpop.f32.mrf.mxu0
          %v689 = vadd.f32 0.0, %v688
          %690 = vmatmul.bf16.gmra.mxu0 %v522
          %v691 = vpop.f32.mrf.mxu0
          %v692 = vadd.f32 0.0, %v691
          %v693 = vpop.f32.mrf.mxu0
          %v694 = vadd.f32 0.0, %v693
          %695 = vmatmul.bf16.gmra.mxu0 %v523
          %v696 = vpop.f32.mrf.mxu0
          %v697 = vadd.f32 0.0, %v696
          %v698 = vpop.f32.mrf.mxu0
          %v699 = vadd.f32 0.0, %v698
          %700 = vmatmul.bf16.gmra.mxu0 %v524
          %v701 = vpop.f32.mrf.mxu0
          %v702 = vadd.f32 0.0, %v701
          %v703 = vpop.f32.mrf.mxu0
          %v704 = vadd.f32 0.0, %v703
          %705 = vmatmul.bf16.gmra.mxu0 %v525
          %v706 = vpop.f32.mrf.mxu0
          %v707 = vadd.f32 0.0, %v706
          %v708 = vpop.f32.mrf.mxu0
          %v709 = vadd.f32 0.0, %v708
          %710 = vmatmul.bf16.gmra.mxu0 %v526
          %v711 = vpop.f32.mrf.mxu0
          %v712 = vadd.f32 0.0, %v711
          %v713 = vpop.f32.mrf.mxu0
          %v714 = vadd.f32 0.0, %v713
          %715 = vmatmul.bf16.gmra.mxu0 %v527
          %v716 = vpop.f32.mrf.mxu0
          %v717 = vadd.f32 0.0, %v716
          %v718 = vpop.f32.mrf.mxu0
          %v719 = vadd.f32 0.0, %v718
          %720 = vmatmul.bf16.gmra.mxu0 %v528
          %v721 = vpop.f32.mrf.mxu0
          %v722 = vadd.f32 0.0, %v721
          %v723 = vpop.f32.mrf.mxu0
          %v724 = vadd.f32 0.0, %v723
          %725 = vmatmul.bf16.gmra.mxu0 %v529
          %v726 = vpop.f32.mrf.mxu0
          %v727 = vadd.f32 0.0, %v726
          %v728 = vpop.f32.mrf.mxu0
          %v729 = vadd.f32 0.0, %v728
          %730 = vmatmul.bf16.gmra.mxu0 %v530
          %v731 = vpop.f32.mrf.mxu0
          %v732 = vadd.f32 0.0, %v731
          %v733 = vpop.f32.mrf.mxu0
          %v734 = vadd.f32 0.0, %v733
          %735 = vmatmul.bf16.gmra.mxu0 %v531
          %v736 = vpop.f32.mrf.mxu0
          %v737 = vadd.f32 0.0, %v736
          %v738 = vpop.f32.mrf.mxu0
          %v739 = vadd.f32 0.0, %v738
          %740 = vmatmul.bf16.gmra.mxu0 %v532
          %v741 = vpop.f32.mrf.mxu0
          %v742 = vadd.f32 0.0, %v741
          %v743 = vpop.f32.mrf.mxu0
          %v744 = vadd.f32 0.0, %v743
          %745 = vmatmul.bf16.gmra.mxu0 %v533
          %v746 = vpop.f32.mrf.mxu0
          %v747 = vadd.f32 0.0, %v746
          %v748 = vpop.f32.mrf.mxu0
          %v749 = vadd.f32 0.0, %v748
          %750 = vmatmul.bf16.gmra.mxu0 %v534
          %v751 = vpop.f32.mrf.mxu0
          %v752 = vadd.f32 0.0, %v751
          %v753 = vpop.f32.mrf.mxu0
          %v754 = vadd.f32 0.0, %v753
          %755 = vmatmul.bf16.gmra.mxu0 %v535
          %v756 = vpop.f32.mrf.mxu0
          %v757 = vadd.f32 0.0, %v756
          %v758 = vpop.f32.mrf.mxu0
          %v759 = vadd.f32 0.0, %v758
          %760 = vmatmul.bf16.gmra.mxu0 %v536
          %v761 = vpop.f32.mrf.mxu0
          %v762 = vadd.f32 0.0, %v761
          %v763 = vpop.f32.mrf.mxu0
          %v764 = vadd.f32 0.0, %v763
          %765 = vmatmul.bf16.gmra.mxu0 %v537
          %v766 = vpop.f32.mrf.mxu0
          %v767 = vadd.f32 0.0, %v766
          %v768 = vpop.f32.mrf.mxu0
          %v769 = vadd.f32 0.0, %v768
          %770 = vmatmul.bf16.gmra.mxu0 %v538
          %v771 = vpop.f32.mrf.mxu0
          %v772 = vadd.f32 0.0, %v771
          %v773 = vpop.f32.mrf.mxu0
          %v774 = vadd.f32 0.0, %v773
          %775 = vmatmul.bf16.gmra.mxu0 %v539
          %v776 = vpop.f32.mrf.mxu0
          %v777 = vadd.f32 0.0, %v776
          %v778 = vpop.f32.mrf.mxu0
          %v779 = vadd.f32 0.0, %v778
          %780 = vmatmul.bf16.gmra.mxu0 %v540
          %v781 = vpop.f32.mrf.mxu0
          %v782 = vadd.f32 0.0, %v781
          %v783 = vpop.f32.mrf.mxu0
          %v784 = vadd.f32 0.0, %v783
          %785 = vmatmul.bf16.gmra.mxu0 %v541
          %v786 = vpop.f32.mrf.mxu0
          %v787 = vadd.f32 0.0, %v786
          %v788 = vpop.f32.mrf.mxu0
          %v789 = vadd.f32 0.0, %v788
          %790 = vdwg.mxu0
          %v791 = vpack.c.bf16 %v632, %v632
          %v792 = vpack.c.bf16 %v634, %v634
          %v793 = vpack.c.bf16 %v637, %v637
          %v794 = vpack.c.bf16 %v639, %v639
          %v795 = vpack.c.bf16 %v642, %v642
          %v796 = vpack.c.bf16 %v644, %v644
          %v797 = vpack.c.bf16 %v647, %v647
          %v798 = vpack.c.bf16 %v649, %v649
          %v799 = vpack.c.bf16 %v652, %v652
          %v800 = vpack.c.bf16 %v654, %v654
          %v801 = vpack.c.bf16 %v657, %v657
          %v802 = vpack.c.bf16 %v659, %v659
          %v803 = vpack.c.bf16 %v662, %v662
          %v804 = vpack.c.bf16 %v664, %v664
          %v805 = vpack.c.bf16 %v667, %v667
          %v806 = vpack.c.bf16 %v669, %v669
          %v807 = vpack.c.bf16 %v672, %v672
          %v808 = vpack.c.bf16 %v674, %v674
          %v809 = vpack.c.bf16 %v677, %v677
          %v810 = vpack.c.bf16 %v679, %v679
          %v811 = vpack.c.bf16 %v682, %v682
          %v812 = vpack.c.bf16 %v684, %v684
          %v813 = vpack.c.bf16 %v687, %v687
          %v814 = vpack.c.bf16 %v689, %v689
          %v815 = vpack.c.bf16 %v692, %v692
          %v816 = vpack.c.bf16 %v694, %v694
          %v817 = vpack.c.bf16 %v697, %v697
          %v818 = vpack.c.bf16 %v699, %v699
          %v819 = vpack.c.bf16 %v702, %v702
          %v820 = vpack.c.bf16 %v704, %v704
          %v821 = vpack.c.bf16 %v707, %v707
          %v822 = vpack.c.bf16 %v709, %v709
          %v823 = vpack.c.bf16 %v712, %v712
          %v824 = vpack.c.bf16 %v714, %v714
          %v825 = vpack.c.bf16 %v717, %v717
          %v826 = vpack.c.bf16 %v719, %v719
          %v827 = vpack.c.bf16 %v722, %v722
          %v828 = vpack.c.bf16 %v724, %v724
          %v829 = vpack.c.bf16 %v727, %v727
          %v830 = vpack.c.bf16 %v729, %v729
          %v831 = vpack.c.bf16 %v732, %v732
          %v832 = vpack.c.bf16 %v734, %v734
          %v833 = vpack.c.bf16 %v737, %v737
          %v834 = vpack.c.bf16 %v739, %v739
          %v835 = vpack.c.bf16 %v742, %v742
          %v836 = vpack.c.bf16 %v744, %v744
          %v837 = vpack.c.bf16 %v747, %v747
          %v838 = vpack.c.bf16 %v749, %v749
          %v839 = vpack.c.bf16 %v752, %v752
          %v840 = vpack.c.bf16 %v754, %v754
          %v841 = vpack.c.bf16 %v757, %v757
          %v842 = vpack.c.bf16 %v759, %v759
          %v843 = vpack.c.bf16 %v762, %v762
          %v844 = vpack.c.bf16 %v764, %v764
          %v845 = vpack.c.bf16 %v767, %v767
          %v846 = vpack.c.bf16 %v769, %v769
          %v847 = vpack.c.bf16 %v772, %v772
          %v848 = vpack.c.bf16 %v774, %v774
          %v849 = vpack.c.bf16 %v777, %v777
          %v850 = vpack.c.bf16 %v779, %v779
          %v851 = vpack.c.bf16 %v782, %v782
          %v852 = vpack.c.bf16 %v784, %v784
          %v853 = vpack.c.bf16 %v787, %v787
          %v854 = vpack.c.bf16 %v789, %v789
          %s855 = smul.u32 %s48, 64
          %s856 = smul.addr %s855, 4
          %s857 = scalar_lea.vmem [#allocation2], %s856
          %858 = vst [vmem:[%s857] sm:$0xf] %v791
          %859 = vst [vmem:[%s857 + $0x4] sm:$0xf] %v792
          %860 = vst [vmem:[%s857 + $0x8] sm:$0xf] %v793
          %861 = vst [vmem:[%s857 + $0xc] sm:$0xf] %v794
          %862 = vst [vmem:[%s857 + $0x10] sm:$0xf] %v795
          %863 = vst [vmem:[%s857 + $0x14] sm:$0xf] %v796
          %864 = vst [vmem:[%s857 + $0x18] sm:$0xf] %v797
          %865 = vst [vmem:[%s857 + $0x1c] sm:$0xf] %v798
          %866 = vst [vmem:[%s857 + $0x20] sm:$0xf] %v799
          %867 = vst [vmem:[%s857 + $0x24] sm:$0xf] %v800
          %868 = vst [vmem:[%s857 + $0x28] sm:$0xf] %v801
          %869 = vst [vmem:[%s857 + $0x2c] sm:$0xf] %v802
          %870 = vst [vmem:[%s857 + $0x30] sm:$0xf] %v803
          %871 = vst [vmem:[%s857 + $0x34] sm:$0xf] %v804
          %872 = vst [vmem:[%s857 + $0x38] sm:$0xf] %v805
          %873 = vst [vmem:[%s857 + $0x3c] sm:$0xf] %v806
          %874 = vst [vmem:[%s857 + $0x40] sm:$0xf] %v807
          %875 = vst [vmem:[%s857 + $0x44] sm:$0xf] %v808
          %876 = vst [vmem:[%s857 + $0x48] sm:$0xf] %v809
          %877 = vst [vmem:[%s857 + $0x4c] sm:$0xf] %v810
          %878 = vst [vmem:[%s857 + $0x50] sm:$0xf] %v811
          %879 = vst [vmem:[%s857 + $0x54] sm:$0xf] %v812
          %880 = vst [vmem:[%s857 + $0x58] sm:$0xf] %v813
          %881 = vst [vmem:[%s857 + $0x5c] sm:$0xf] %v814
          %882 = vst [vmem:[%s857 + $0x60] sm:$0xf] %v815
          %883 = vst [vmem:[%s857 + $0x64] sm:$0xf] %v816
          %884 = vst [vmem:[%s857 + $0x68] sm:$0xf] %v817
          %885 = vst [vmem:[%s857 + $0x6c] sm:$0xf] %v818
          %886 = vst [vmem:[%s857 + $0x70] sm:$0xf] %v819
          %887 = vst [vmem:[%s857 + $0x74] sm:$0xf] %v820
          %888 = vst [vmem:[%s857 + $0x78] sm:$0xf] %v821
          %889 = vst [vmem:[%s857 + $0x7c] sm:$0xf] %v822
          %890 = vst [vmem:[%s857 + $0x80] sm:$0xf] %v823
          %891 = vst [vmem:[%s857 + $0x84] sm:$0xf] %v824
          %892 = vst [vmem:[%s857 + $0x88] sm:$0xf] %v825
          %893 = vst [vmem:[%s857 + $0x8c] sm:$0xf] %v826
          %894 = vst [vmem:[%s857 + $0x90] sm:$0xf] %v827
          %895 = vst [vmem:[%s857 + $0x94] sm:$0xf] %v828
          %896 = vst [vmem:[%s857 + $0x98] sm:$0xf] %v829
          %897 = vst [vmem:[%s857 + $0x9c] sm:$0xf] %v830
          %898 = vst [vmem:[%s857 + $0xa0] sm:$0xf] %v831
          %899 = vst [vmem:[%s857 + $0xa4] sm:$0xf] %v832
          %900 = vst [vmem:[%s857 + $0xa8] sm:$0xf] %v833
          %901 = vst [vmem:[%s857 + $0xac] sm:$0xf] %v834
          %902 = vst [vmem:[%s857 + $0xb0] sm:$0xf] %v835
          %903 = vst [vmem:[%s857 + $0xb4] sm:$0xf] %v836
          %904 = vst [vmem:[%s857 + $0xb8] sm:$0xf] %v837
          %905 = vst [vmem:[%s857 + $0xbc] sm:$0xf] %v838
          %906 = vst [vmem:[%s857 + $0xc0] sm:$0xf] %v839
          %907 = vst [vmem:[%s857 + $0xc4] sm:$0xf] %v840
          %908 = vst [vmem:[%s857 + $0xc8] sm:$0xf] %v841
          %909 = vst [vmem:[%s857 + $0xcc] sm:$0xf] %v842
          %910 = vst [vmem:[%s857 + $0xd0] sm:$0xf] %v843
          %911 = vst [vmem:[%s857 + $0xd4] sm:$0xf] %v844
          %912 = vst [vmem:[%s857 + $0xd8] sm:$0xf] %v845
          %913 = vst [vmem:[%s857 + $0xdc] sm:$0xf] %v846
          %914 = vst [vmem:[%s857 + $0xe0] sm:$0xf] %v847
          %915 = vst [vmem:[%s857 + $0xe4] sm:$0xf] %v848
          %916 = vst [vmem:[%s857 + $0xe8] sm:$0xf] %v849
          %917 = vst [vmem:[%s857 + $0xec] sm:$0xf] %v850
          %918 = vst [vmem:[%s857 + $0xf0] sm:$0xf] %v851
          %919 = vst [vmem:[%s857 + $0xf4] sm:$0xf] %v852
          %920 = vst [vmem:[%s857 + $0xf8] sm:$0xf] %v853
          %921 = vst [vmem:[%s857 + $0xfc] sm:$0xf] %v854
        $region48: #{tpu_custom_call.1} parent=31 // pred_fallthru
          _
        %p922 = scmp.ge.s32.totalorder %s48, 2
        %s923 = sld [smem:[#allocation7 + %s48]]
        %p924 = scmp.eq.s32.totalorder %s923, 1
        %p925 = pnand %p922, %p924
        %p926 = pneg %p925
        // Predicated region
        $region49: #{tpu_custom_call.1} parent=31 // pred_check
          _
        $region50: #{tpu_custom_call.1} parent=31 // pred_check_branch
          %928 = sbr.rel (%p925) target = $region52
        $region51: #{tpu_custom_call.1} parent=31 // pred_region
          %929 = vst [vmem:[%s289] sm:$0xff] 0.0
          %930 = vst [vmem:[%s289 + $0x8] sm:$0xff] 0.0
          %931 = vst [vmem:[%s289 + $0x10] sm:$0xff] 0.0
          %932 = vst [vmem:[%s289 + $0x18] sm:$0xff] 0.0
          %933 = vst [vmem:[%s289 + $0x20] sm:$0xff] 0.0
          %934 = vst [vmem:[%s289 + $0x28] sm:$0xff] 0.0
          %935 = vst [vmem:[%s289 + $0x30] sm:$0xff] 0.0
          %936 = vst [vmem:[%s289 + $0x38] sm:$0xff] 0.0
          %937 = vst [vmem:[%s289 + $0x40] sm:$0xff] 0.0
          %938 = vst [vmem:[%s289 + $0x48] sm:$0xff] 0.0
          %939 = vst [vmem:[%s289 + $0x50] sm:$0xff] 0.0
          %940 = vst [vmem:[%s289 + $0x58] sm:$0xff] 0.0
          %941 = vst [vmem:[%s289 + $0x60] sm:$0xff] 0.0
          %942 = vst [vmem:[%s289 + $0x68] sm:$0xff] 0.0
          %943 = vst [vmem:[%s289 + $0x70] sm:$0xff] 0.0
          %944 = vst [vmem:[%s289 + $0x78] sm:$0xff] 0.0
          %945 = vst [vmem:[%s289 + $0x80] sm:$0xff] 0.0
          %946 = vst [vmem:[%s289 + $0x88] sm:$0xff] 0.0
          %947 = vst [vmem:[%s289 + $0x90] sm:$0xff] 0.0
          %948 = vst [vmem:[%s289 + $0x98] sm:$0xff] 0.0
          %949 = vst [vmem:[%s289 + $0xa0] sm:$0xff] 0.0
          %950 = vst [vmem:[%s289 + $0xa8] sm:$0xff] 0.0
          %951 = vst [vmem:[%s289 + $0xb0] sm:$0xff] 0.0
          %952 = vst [vmem:[%s289 + $0xb8] sm:$0xff] 0.0
          %953 = vst [vmem:[%s289 + $0xc0] sm:$0xff] 0.0
          %954 = vst [vmem:[%s289 + $0xc8] sm:$0xff] 0.0
          %955 = vst [vmem:[%s289 + $0xd0] sm:$0xff] 0.0
          %956 = vst [vmem:[%s289 + $0xd8] sm:$0xff] 0.0
          %957 = vst [vmem:[%s289 + $0xe0] sm:$0xff] 0.0
          %958 = vst [vmem:[%s289 + $0xe8] sm:$0xff] 0.0
          %959 = vst [vmem:[%s289 + $0xf0] sm:$0xff] 0.0
          %960 = vst [vmem:[%s289 + $0xf8] sm:$0xff] 0.0
          %961 = vst [vmem:[%s289 + $0x100] sm:$0xff] 0.0
          %962 = vst [vmem:[%s289 + $0x108] sm:$0xff] 0.0
          %963 = vst [vmem:[%s289 + $0x110] sm:$0xff] 0.0
          %964 = vst [vmem:[%s289 + $0x118] sm:$0xff] 0.0
          %965 = vst [vmem:[%s289 + $0x120] sm:$0xff] 0.0
          %966 = vst [vmem:[%s289 + $0x128] sm:$0xff] 0.0
          %967 = vst [vmem:[%s289 + $0x130] sm:$0xff] 0.0
          %968 = vst [vmem:[%s289 + $0x138] sm:$0xff] 0.0
          %969 = vst [vmem:[%s289 + $0x140] sm:$0xff] 0.0
          %970 = vst [vmem:[%s289 + $0x148] sm:$0xff] 0.0
          %971 = vst [vmem:[%s289 + $0x150] sm:$0xff] 0.0
          %972 = vst [vmem:[%s289 + $0x158] sm:$0xff] 0.0
          %973 = vst [vmem:[%s289 + $0x160] sm:$0xff] 0.0
          %974 = vst [vmem:[%s289 + $0x168] sm:$0xff] 0.0
          %975 = vst [vmem:[%s289 + $0x170] sm:$0xff] 0.0
          %976 = vst [vmem:[%s289 + $0x178] sm:$0xff] 0.0
          %977 = vst [vmem:[%s289 + $0x180] sm:$0xff] 0.0
          %978 = vst [vmem:[%s289 + $0x188] sm:$0xff] 0.0
          %979 = vst [vmem:[%s289 + $0x190] sm:$0xff] 0.0
          %980 = vst [vmem:[%s289 + $0x198] sm:$0xff] 0.0
          %981 = vst [vmem:[%s289 + $0x1a0] sm:$0xff] 0.0
          %982 = vst [vmem:[%s289 + $0x1a8] sm:$0xff] 0.0
          %983 = vst [vmem:[%s289 + $0x1b0] sm:$0xff] 0.0
          %984 = vst [vmem:[%s289 + $0x1b8] sm:$0xff] 0.0
          %985 = vst [vmem:[%s289 + $0x1c0] sm:$0xff] 0.0
          %986 = vst [vmem:[%s289 + $0x1c8] sm:$0xff] 0.0
          %987 = vst [vmem:[%s289 + $0x1d0] sm:$0xff] 0.0
          %988 = vst [vmem:[%s289 + $0x1d8] sm:$0xff] 0.0
          %989 = vst [vmem:[%s289 + $0x1e0] sm:$0xff] 0.0
          %990 = vst [vmem:[%s289 + $0x1e8] sm:$0xff] 0.0
          %991 = vst [vmem:[%s289 + $0x1f0] sm:$0xff] 0.0
          %992 = vst [vmem:[%s289 + $0x1f8] sm:$0xff] 0.0
        $region52: #{tpu_custom_call.1} parent=31 // pred_fallthru
          _
        // Predicated region
        $region53: #{tpu_custom_call.1} parent=31 // pred_check
          %p993 = pneg %p922
        $region54: #{tpu_custom_call.1} parent=31 // pred_check_branch
          %995 = sbr.rel (%p993) target = $region56
        $region55: #{tpu_custom_call.1} parent=31 // pred_region
          %s996 = sld [smem:[#allocation6 + %s48]]
          %v997 = vld [vmem:[%s261] sm:$0xff]
          %v998 = vld [vmem:[%s261 + $0x8] sm:$0xff]
          %v999 = vld [vmem:[%s261 + $0x10] sm:$0xff]
          %v1000 = vld [vmem:[%s261 + $0x18] sm:$0xff]
          %v1001 = vld [vmem:[%s261 + $0x20] sm:$0xff]
          %v1002 = vld [vmem:[%s261 + $0x28] sm:$0xff]
          %v1003 = vld [vmem:[%s261 + $0x30] sm:$0xff]
          %v1004 = vld [vmem:[%s261 + $0x38] sm:$0xff]
          %v1005 = vld [vmem:[%s261 + $0x40] sm:$0xff]
          %v1006 = vld [vmem:[%s261 + $0x48] sm:$0xff]
          %v1007 = vld [vmem:[%s261 + $0x50] sm:$0xff]
          %v1008 = vld [vmem:[%s261 + $0x58] sm:$0xff]
          %v1009 = vld [vmem:[%s261 + $0x60] sm:$0xff]
          %v1010 = vld [vmem:[%s261 + $0x68] sm:$0xff]
          %v1011 = vld [vmem:[%s261 + $0x70] sm:$0xff]
          %v1012 = vld [vmem:[%s261 + $0x78] sm:$0xff]
          %v1013 = vld [vmem:[%s261 + $0x80] sm:$0xff]
          %v1014 = vld [vmem:[%s261 + $0x88] sm:$0xff]
          %v1015 = vld [vmem:[%s261 + $0x90] sm:$0xff]
          %v1016 = vld [vmem:[%s261 + $0x98] sm:$0xff]
          %v1017 = vld [vmem:[%s261 + $0xa0] sm:$0xff]
          %v1018 = vld [vmem:[%s261 + $0xa8] sm:$0xff]
          %v1019 = vld [vmem:[%s261 + $0xb0] sm:$0xff]
          %v1020 = vld [vmem:[%s261 + $0xb8] sm:$0xff]
          %v1021 = vld [vmem:[%s261 + $0xc0] sm:$0xff]
          %v1022 = vld [vmem:[%s261 + $0xc8] sm:$0xff]
          %v1023 = vld [vmem:[%s261 + $0xd0] sm:$0xff]
          %v1024 = vld [vmem:[%s261 + $0xd8] sm:$0xff]
          %v1025 = vld [vmem:[%s261 + $0xe0] sm:$0xff]
          %v1026 = vld [vmem:[%s261 + $0xe8] sm:$0xff]
          %v1027 = vld [vmem:[%s261 + $0xf0] sm:$0xff]
          %v1028 = vld [vmem:[%s261 + $0xf8] sm:$0xff]
          %v1029 = vld [vmem:[%s261 + $0x100] sm:$0xff]
          %v1030 = vld [vmem:[%s261 + $0x108] sm:$0xff]
          %v1031 = vld [vmem:[%s261 + $0x110] sm:$0xff]
          %v1032 = vld [vmem:[%s261 + $0x118] sm:$0xff]
          %v1033 = vld [vmem:[%s261 + $0x120] sm:$0xff]
          %v1034 = vld [vmem:[%s261 + $0x128] sm:$0xff]
          %v1035 = vld [vmem:[%s261 + $0x130] sm:$0xff]
          %v1036 = vld [vmem:[%s261 + $0x138] sm:$0xff]
          %v1037 = vld [vmem:[%s261 + $0x140] sm:$0xff]
          %v1038 = vld [vmem:[%s261 + $0x148] sm:$0xff]
          %v1039 = vld [vmem:[%s261 + $0x150] sm:$0xff]
          %v1040 = vld [vmem:[%s261 + $0x158] sm:$0xff]
          %v1041 = vld [vmem:[%s261 + $0x160] sm:$0xff]
          %v1042 = vld [vmem:[%s261 + $0x168] sm:$0xff]
          %v1043 = vld [vmem:[%s261 + $0x170] sm:$0xff]
          %v1044 = vld [vmem:[%s261 + $0x178] sm:$0xff]
          %v1045 = vld [vmem:[%s261 + $0x180] sm:$0xff]
          %v1046 = vld [vmem:[%s261 + $0x188] sm:$0xff]
          %v1047 = vld [vmem:[%s261 + $0x190] sm:$0xff]
          %v1048 = vld [vmem:[%s261 + $0x198] sm:$0xff]
          %v1049 = vld [vmem:[%s261 + $0x1a0] sm:$0xff]
          %v1050 = vld [vmem:[%s261 + $0x1a8] sm:$0xff]
          %v1051 = vld [vmem:[%s261 + $0x1b0] sm:$0xff]
          %v1052 = vld [vmem:[%s261 + $0x1b8] sm:$0xff]
          %v1053 = vld [vmem:[%s261 + $0x1c0] sm:$0xff]
          %v1054 = vld [vmem:[%s261 + $0x1c8] sm:$0xff]
          %v1055 = vld [vmem:[%s261 + $0x1d0] sm:$0xff]
          %v1056 = vld [vmem:[%s261 + $0x1d8] sm:$0xff]
          %v1057 = vld [vmem:[%s261 + $0x1e0] sm:$0xff]
          %v1058 = vld [vmem:[%s261 + $0x1e8] sm:$0xff]
          %v1059 = vld [vmem:[%s261 + $0x1f0] sm:$0xff]
          %v1060 = vld [vmem:[%s261 + $0x1f8] sm:$0xff]
          %v1061 = vunpack.c.0.s8 %v997
          %v1062 = vunpack.c.0.s8 %v998
          %v1063 = vunpack.c.0.s8 %v999
          %v1064 = vunpack.c.0.s8 %v1000
          %v1065 = vunpack.c.1.s8 %v997
          %v1066 = vunpack.c.1.s8 %v998
          %v1067 = vunpack.c.1.s8 %v999
          %v1068 = vunpack.c.1.s8 %v1000
          %v1069 = vunpack.c.2.s8 %v997
          %v1070 = vunpack.c.2.s8 %v998
          %v1071 = vunpack.c.2.s8 %v999
          %v1072 = vunpack.c.2.s8 %v1000
          %v1073 = vunpack.c.3.s8 %v997
          %v1074 = vunpack.c.3.s8 %v998
          %v1075 = vunpack.c.3.s8 %v999
          %v1076 = vunpack.c.3.s8 %v1000
          %v1077 = vunpack.c.0.s8 %v1001
          %v1078 = vunpack.c.0.s8 %v1002
          %v1079 = vunpack.c.0.s8 %v1003
          %v1080 = vunpack.c.0.s8 %v1004
          %v1081 = vunpack.c.1.s8 %v1001
          %v1082 = vunpack.c.1.s8 %v1002
          %v1083 = vunpack.c.1.s8 %v1003
          %v1084 = vunpack.c.1.s8 %v1004
          %v1085 = vunpack.c.2.s8 %v1001
          %v1086 = vunpack.c.2.s8 %v1002
          %v1087 = vunpack.c.2.s8 %v1003
          %v1088 = vunpack.c.2.s8 %v1004
          %v1089 = vunpack.c.3.s8 %v1001
          %v1090 = vunpack.c.3.s8 %v1002
          %v1091 = vunpack.c.3.s8 %v1003
          %v1092 = vunpack.c.3.s8 %v1004
          %v1093 = vunpack.c.0.s8 %v1005
          %v1094 = vunpack.c.0.s8 %v1006
          %v1095 = vunpack.c.0.s8 %v1007
          %v1096 = vunpack.c.0.s8 %v1008
          %v1097 = vunpack.c.1.s8 %v1005
          %v1098 = vunpack.c.1.s8 %v1006
          %v1099 = vunpack.c.1.s8 %v1007
          %v1100 = vunpack.c.1.s8 %v1008
          %v1101 = vunpack.c.2.s8 %v1005
          %v1102 = vunpack.c.2.s8 %v1006
          %v1103 = vunpack.c.2.s8 %v1007
          %v1104 = vunpack.c.2.s8 %v1008
          %v1105 = vunpack.c.3.s8 %v1005
          %v1106 = vunpack.c.3.s8 %v1006
          %v1107 = vunpack.c.3.s8 %v1007
          %v1108 = vunpack.c.3.s8 %v1008
          %v1109 = vunpack.c.0.s8 %v1009
          %v1110 = vunpack.c.0.s8 %v1010
          %v1111 = vunpack.c.0.s8 %v1011
          %v1112 = vunpack.c.0.s8 %v1012
          %v1113 = vunpack.c.1.s8 %v1009
          %v1114 = vunpack.c.1.s8 %v1010
          %v1115 = vunpack.c.1.s8 %v1011
          %v1116 = vunpack.c.1.s8 %v1012
          %v1117 = vunpack.c.2.s8 %v1009
          %v1118 = vunpack.c.2.s8 %v1010
          %v1119 = vunpack.c.2.s8 %v1011
          %v1120 = vunpack.c.2.s8 %v1012
          %v1121 = vunpack.c.3.s8 %v1009
          %v1122 = vunpack.c.3.s8 %v1010
          %v1123 = vunpack.c.3.s8 %v1011
          %v1124 = vunpack.c.3.s8 %v1012
          %v1125 = vunpack.c.0.s8 %v1013
          %v1126 = vunpack.c.0.s8 %v1014
          %v1127 = vunpack.c.0.s8 %v1015
          %v1128 = vunpack.c.0.s8 %v1016
          %v1129 = vunpack.c.1.s8 %v1013
          %v1130 = vunpack.c.1.s8 %v1014
          %v1131 = vunpack.c.1.s8 %v1015
          %v1132 = vunpack.c.1.s8 %v1016
          %v1133 = vunpack.c.2.s8 %v1013
          %v1134 = vunpack.c.2.s8 %v1014
          %v1135 = vunpack.c.2.s8 %v1015
          %v1136 = vunpack.c.2.s8 %v1016
          %v1137 = vunpack.c.3.s8 %v1013
          %v1138 = vunpack.c.3.s8 %v1014
          %v1139 = vunpack.c.3.s8 %v1015
          %v1140 = vunpack.c.3.s8 %v1016
          %v1141 = vunpack.c.0.s8 %v1017
          %v1142 = vunpack.c.0.s8 %v1018
          %v1143 = vunpack.c.0.s8 %v1019
          %v1144 = vunpack.c.0.s8 %v1020
          %v1145 = vunpack.c.1.s8 %v1017
          %v1146 = vunpack.c.1.s8 %v1018
          %v1147 = vunpack.c.1.s8 %v1019
          %v1148 = vunpack.c.1.s8 %v1020
          %v1149 = vunpack.c.2.s8 %v1017
          %v1150 = vunpack.c.2.s8 %v1018
          %v1151 = vunpack.c.2.s8 %v1019
          %v1152 = vunpack.c.2.s8 %v1020
          %v1153 = vunpack.c.3.s8 %v1017
          %v1154 = vunpack.c.3.s8 %v1018
          %v1155 = vunpack.c.3.s8 %v1019
          %v1156 = vunpack.c.3.s8 %v1020
          %v1157 = vunpack.c.0.s8 %v1021
          %v1158 = vunpack.c.0.s8 %v1022
          %v1159 = vunpack.c.0.s8 %v1023
          %v1160 = vunpack.c.0.s8 %v1024
          %v1161 = vunpack.c.1.s8 %v1021
          %v1162 = vunpack.c.1.s8 %v1022
          %v1163 = vunpack.c.1.s8 %v1023
          %v1164 = vunpack.c.1.s8 %v1024
          %v1165 = vunpack.c.2.s8 %v1021
          %v1166 = vunpack.c.2.s8 %v1022
          %v1167 = vunpack.c.2.s8 %v1023
          %v1168 = vunpack.c.2.s8 %v1024
          %v1169 = vunpack.c.3.s8 %v1021
          %v1170 = vunpack.c.3.s8 %v1022
          %v1171 = vunpack.c.3.s8 %v1023
          %v1172 = vunpack.c.3.s8 %v1024
          %v1173 = vunpack.c.0.s8 %v1025
          %v1174 = vunpack.c.0.s8 %v1026
          %v1175 = vunpack.c.0.s8 %v1027
          %v1176 = vunpack.c.0.s8 %v1028
          %v1177 = vunpack.c.1.s8 %v1025
          %v1178 = vunpack.c.1.s8 %v1026
          %v1179 = vunpack.c.1.s8 %v1027
          %v1180 = vunpack.c.1.s8 %v1028
          %v1181 = vunpack.c.2.s8 %v1025
          %v1182 = vunpack.c.2.s8 %v1026
          %v1183 = vunpack.c.2.s8 %v1027
          %v1184 = vunpack.c.2.s8 %v1028
          %v1185 = vunpack.c.3.s8 %v1025
          %v1186 = vunpack.c.3.s8 %v1026
          %v1187 = vunpack.c.3.s8 %v1027
          %v1188 = vunpack.c.3.s8 %v1028
          %v1189 = vunpack.c.0.s8 %v1029
          %v1190 = vunpack.c.0.s8 %v1030
          %v1191 = vunpack.c.0.s8 %v1031
          %v1192 = vunpack.c.0.s8 %v1032
          %v1193 = vunpack.c.1.s8 %v1029
          %v1194 = vunpack.c.1.s8 %v1030
          %v1195 = vunpack.c.1.s8 %v1031
          %v1196 = vunpack.c.1.s8 %v1032
          %v1197 = vunpack.c.2.s8 %v1029
          %v1198 = vunpack.c.2.s8 %v1030
          %v1199 = vunpack.c.2.s8 %v1031
          %v1200 = vunpack.c.2.s8 %v1032
          %v1201 = vunpack.c.3.s8 %v1029
          %v1202 = vunpack.c.3.s8 %v1030
          %v1203 = vunpack.c.3.s8 %v1031
          %v1204 = vunpack.c.3.s8 %v1032
          %v1205 = vunpack.c.0.s8 %v1033
          %v1206 = vunpack.c.0.s8 %v1034
          %v1207 = vunpack.c.0.s8 %v1035
          %v1208 = vunpack.c.0.s8 %v1036
          %v1209 = vunpack.c.1.s8 %v1033
          %v1210 = vunpack.c.1.s8 %v1034
          %v1211 = vunpack.c.1.s8 %v1035
          %v1212 = vunpack.c.1.s8 %v1036
          %v1213 = vunpack.c.2.s8 %v1033
          %v1214 = vunpack.c.2.s8 %v1034
          %v1215 = vunpack.c.2.s8 %v1035
          %v1216 = vunpack.c.2.s8 %v1036
          %v1217 = vunpack.c.3.s8 %v1033
          %v1218 = vunpack.c.3.s8 %v1034
          %v1219 = vunpack.c.3.s8 %v1035
          %v1220 = vunpack.c.3.s8 %v1036
          %v1221 = vunpack.c.0.s8 %v1037
          %v1222 = vunpack.c.0.s8 %v1038
          %v1223 = vunpack.c.0.s8 %v1039
          %v1224 = vunpack.c.0.s8 %v1040
          %v1225 = vunpack.c.1.s8 %v1037
          %v1226 = vunpack.c.1.s8 %v1038
          %v1227 = vunpack.c.1.s8 %v1039
          %v1228 = vunpack.c.1.s8 %v1040
          %v1229 = vunpack.c.2.s8 %v1037
          %v1230 = vunpack.c.2.s8 %v1038
          %v1231 = vunpack.c.2.s8 %v1039
          %v1232 = vunpack.c.2.s8 %v1040
          %v1233 = vunpack.c.3.s8 %v1037
          %v1234 = vunpack.c.3.s8 %v1038
          %v1235 = vunpack.c.3.s8 %v1039
          %v1236 = vunpack.c.3.s8 %v1040
          %v1237 = vunpack.c.0.s8 %v1041
          %v1238 = vunpack.c.0.s8 %v1042
          %v1239 = vunpack.c.0.s8 %v1043
          %v1240 = vunpack.c.0.s8 %v1044
          %v1241 = vunpack.c.1.s8 %v1041
          %v1242 = vunpack.c.1.s8 %v1042
          %v1243 = vunpack.c.1.s8 %v1043
          %v1244 = vunpack.c.1.s8 %v1044
          %v1245 = vunpack.c.2.s8 %v1041
          %v1246 = vunpack.c.2.s8 %v1042
          %v1247 = vunpack.c.2.s8 %v1043
          %v1248 = vunpack.c.2.s8 %v1044
          %v1249 = vunpack.c.3.s8 %v1041
          %v1250 = vunpack.c.3.s8 %v1042
          %v1251 = vunpack.c.3.s8 %v1043
          %v1252 = vunpack.c.3.s8 %v1044
          %v1253 = vunpack.c.0.s8 %v1045
          %v1254 = vunpack.c.0.s8 %v1046
          %v1255 = vunpack.c.0.s8 %v1047
          %v1256 = vunpack.c.0.s8 %v1048
          %v1257 = vunpack.c.1.s8 %v1045
          %v1258 = vunpack.c.1.s8 %v1046
          %v1259 = vunpack.c.1.s8 %v1047
          %v1260 = vunpack.c.1.s8 %v1048
          %v1261 = vunpack.c.2.s8 %v1045
          %v1262 = vunpack.c.2.s8 %v1046
          %v1263 = vunpack.c.2.s8 %v1047
          %v1264 = vunpack.c.2.s8 %v1048
          %v1265 = vunpack.c.3.s8 %v1045
          %v1266 = vunpack.c.3.s8 %v1046
          %v1267 = vunpack.c.3.s8 %v1047
          %v1268 = vunpack.c.3.s8 %v1048
          %v1269 = vunpack.c.0.s8 %v1049
          %v1270 = vunpack.c.0.s8 %v1050
          %v1271 = vunpack.c.0.s8 %v1051
          %v1272 = vunpack.c.0.s8 %v1052
          %v1273 = vunpack.c.1.s8 %v1049
          %v1274 = vunpack.c.1.s8 %v1050
          %v1275 = vunpack.c.1.s8 %v1051
          %v1276 = vunpack.c.1.s8 %v1052
          %v1277 = vunpack.c.2.s8 %v1049
          %v1278 = vunpack.c.2.s8 %v1050
          %v1279 = vunpack.c.2.s8 %v1051
          %v1280 = vunpack.c.2.s8 %v1052
          %v1281 = vunpack.c.3.s8 %v1049
          %v1282 = vunpack.c.3.s8 %v1050
          %v1283 = vunpack.c.3.s8 %v1051
          %v1284 = vunpack.c.3.s8 %v1052
          %v1285 = vunpack.c.0.s8 %v1053
          %v1286 = vunpack.c.0.s8 %v1054
          %v1287 = vunpack.c.0.s8 %v1055
          %v1288 = vunpack.c.0.s8 %v1056
          %v1289 = vunpack.c.1.s8 %v1053
          %v1290 = vunpack.c.1.s8 %v1054
          %v1291 = vunpack.c.1.s8 %v1055
          %v1292 = vunpack.c.1.s8 %v1056
          %v1293 = vunpack.c.2.s8 %v1053
          %v1294 = vunpack.c.2.s8 %v1054
          %v1295 = vunpack.c.2.s8 %v1055
          %v1296 = vunpack.c.2.s8 %v1056
          %v1297 = vunpack.c.3.s8 %v1053
          %v1298 = vunpack.c.3.s8 %v1054
          %v1299 = vunpack.c.3.s8 %v1055
          %v1300 = vunpack.c.3.s8 %v1056
          %v1301 = vunpack.c.0.s8 %v1057
          %v1302 = vunpack.c.0.s8 %v1058
          %v1303 = vunpack.c.0.s8 %v1059
          %v1304 = vunpack.c.0.s8 %v1060
          %v1305 = vunpack.c.1.s8 %v1057
          %v1306 = vunpack.c.1.s8 %v1058
          %v1307 = vunpack.c.1.s8 %v1059
          %v1308 = vunpack.c.1.s8 %v1060
          %v1309 = vunpack.c.2.s8 %v1057
          %v1310 = vunpack.c.2.s8 %v1058
          %v1311 = vunpack.c.2.s8 %v1059
          %v1312 = vunpack.c.2.s8 %v1060
          %v1313 = vunpack.c.3.s8 %v1057
          %v1314 = vunpack.c.3.s8 %v1058
          %v1315 = vunpack.c.3.s8 %v1059
          %v1316 = vunpack.c.3.s8 %v1060
          %v1317 = vcvt.s32.f32 %v1061
          %v1318 = vcvt.s32.f32 %v1062
          %v1319 = vcvt.s32.f32 %v1063
          %v1320 = vcvt.s32.f32 %v1064
          %v1321 = vcvt.s32.f32 %v1065
          %v1322 = vcvt.s32.f32 %v1066
          %v1323 = vcvt.s32.f32 %v1067
          %v1324 = vcvt.s32.f32 %v1068
          %v1325 = vcvt.s32.f32 %v1069
          %v1326 = vcvt.s32.f32 %v1070
          %v1327 = vcvt.s32.f32 %v1071
          %v1328 = vcvt.s32.f32 %v1072
          %v1329 = vcvt.s32.f32 %v1073
          %v1330 = vcvt.s32.f32 %v1074
          %v1331 = vcvt.s32.f32 %v1075
          %v1332 = vcvt.s32.f32 %v1076
          %v1333 = vcvt.s32.f32 %v1077
          %v1334 = vcvt.s32.f32 %v1078
          %v1335 = vcvt.s32.f32 %v1079
          %v1336 = vcvt.s32.f32 %v1080
          %v1337 = vcvt.s32.f32 %v1081
          %v1338 = vcvt.s32.f32 %v1082
          %v1339 = vcvt.s32.f32 %v1083
          %v1340 = vcvt.s32.f32 %v1084
          %v1341 = vcvt.s32.f32 %v1085
          %v1342 = vcvt.s32.f32 %v1086
          %v1343 = vcvt.s32.f32 %v1087
          %v1344 = vcvt.s32.f32 %v1088
          %v1345 = vcvt.s32.f32 %v1089
          %v1346 = vcvt.s32.f32 %v1090
          %v1347 = vcvt.s32.f32 %v1091
          %v1348 = vcvt.s32.f32 %v1092
          %v1349 = vcvt.s32.f32 %v1093
          %v1350 = vcvt.s32.f32 %v1094
          %v1351 = vcvt.s32.f32 %v1095
          %v1352 = vcvt.s32.f32 %v1096
          %v1353 = vcvt.s32.f32 %v1097
          %v1354 = vcvt.s32.f32 %v1098
          %v1355 = vcvt.s32.f32 %v1099
          %v1356 = vcvt.s32.f32 %v1100
          %v1357 = vcvt.s32.f32 %v1101
          %v1358 = vcvt.s32.f32 %v1102
          %v1359 = vcvt.s32.f32 %v1103
          %v1360 = vcvt.s32.f32 %v1104
          %v1361 = vcvt.s32.f32 %v1105
          %v1362 = vcvt.s32.f32 %v1106
          %v1363 = vcvt.s32.f32 %v1107
          %v1364 = vcvt.s32.f32 %v1108
          %v1365 = vcvt.s32.f32 %v1109
          %v1366 = vcvt.s32.f32 %v1110
          %v1367 = vcvt.s32.f32 %v1111
          %v1368 = vcvt.s32.f32 %v1112
          %v1369 = vcvt.s32.f32 %v1113
          %v1370 = vcvt.s32.f32 %v1114
          %v1371 = vcvt.s32.f32 %v1115
          %v1372 = vcvt.s32.f32 %v1116
          %v1373 = vcvt.s32.f32 %v1117
          %v1374 = vcvt.s32.f32 %v1118
          %v1375 = vcvt.s32.f32 %v1119
          %v1376 = vcvt.s32.f32 %v1120
          %v1377 = vcvt.s32.f32 %v1121
          %v1378 = vcvt.s32.f32 %v1122
          %v1379 = vcvt.s32.f32 %v1123
          %v1380 = vcvt.s32.f32 %v1124
          %v1381 = vcvt.s32.f32 %v1125
          %v1382 = vcvt.s32.f32 %v1126
          %v1383 = vcvt.s32.f32 %v1127
          %v1384 = vcvt.s32.f32 %v1128
          %v1385 = vcvt.s32.f32 %v1129
          %v1386 = vcvt.s32.f32 %v1130
          %v1387 = vcvt.s32.f32 %v1131
          %v1388 = vcvt.s32.f32 %v1132
          %v1389 = vcvt.s32.f32 %v1133
          %v1390 = vcvt.s32.f32 %v1134
          %v1391 = vcvt.s32.f32 %v1135
          %v1392 = vcvt.s32.f32 %v1136
          %v1393 = vcvt.s32.f32 %v1137
          %v1394 = vcvt.s32.f32 %v1138
          %v1395 = vcvt.s32.f32 %v1139
          %v1396 = vcvt.s32.f32 %v1140
          %v1397 = vcvt.s32.f32 %v1141
          %v1398 = vcvt.s32.f32 %v1142
          %v1399 = vcvt.s32.f32 %v1143
          %v1400 = vcvt.s32.f32 %v1144
          %v1401 = vcvt.s32.f32 %v1145
          %v1402 = vcvt.s32.f32 %v1146
          %v1403 = vcvt.s32.f32 %v1147
          %v1404 = vcvt.s32.f32 %v1148
          %v1405 = vcvt.s32.f32 %v1149
          %v1406 = vcvt.s32.f32 %v1150
          %v1407 = vcvt.s32.f32 %v1151
          %v1408 = vcvt.s32.f32 %v1152
          %v1409 = vcvt.s32.f32 %v1153
          %v1410 = vcvt.s32.f32 %v1154
          %v1411 = vcvt.s32.f32 %v1155
          %v1412 = vcvt.s32.f32 %v1156
          %v1413 = vcvt.s32.f32 %v1157
          %v1414 = vcvt.s32.f32 %v1158
          %v1415 = vcvt.s32.f32 %v1159
          %v1416 = vcvt.s32.f32 %v1160
          %v1417 = vcvt.s32.f32 %v1161
          %v1418 = vcvt.s32.f32 %v1162
          %v1419 = vcvt.s32.f32 %v1163
          %v1420 = vcvt.s32.f32 %v1164
          %v1421 = vcvt.s32.f32 %v1165
          %v1422 = vcvt.s32.f32 %v1166
          %v1423 = vcvt.s32.f32 %v1167
          %v1424 = vcvt.s32.f32 %v1168
          %v1425 = vcvt.s32.f32 %v1169
          %v1426 = vcvt.s32.f32 %v1170
          %v1427 = vcvt.s32.f32 %v1171
          %v1428 = vcvt.s32.f32 %v1172
          %v1429 = vcvt.s32.f32 %v1173
          %v1430 = vcvt.s32.f32 %v1174
          %v1431 = vcvt.s32.f32 %v1175
          %v1432 = vcvt.s32.f32 %v1176
          %v1433 = vcvt.s32.f32 %v1177
          %v1434 = vcvt.s32.f32 %v1178
          %v1435 = vcvt.s32.f32 %v1179
          %v1436 = vcvt.s32.f32 %v1180
          %v1437 = vcvt.s32.f32 %v1181
          %v1438 = vcvt.s32.f32 %v1182
          %v1439 = vcvt.s32.f32 %v1183
          %v1440 = vcvt.s32.f32 %v1184
          %v1441 = vcvt.s32.f32 %v1185
          %v1442 = vcvt.s32.f32 %v1186
          %v1443 = vcvt.s32.f32 %v1187
          %v1444 = vcvt.s32.f32 %v1188
          %v1445 = vcvt.s32.f32 %v1189
          %v1446 = vcvt.s32.f32 %v1190
          %v1447 = vcvt.s32.f32 %v1191
          %v1448 = vcvt.s32.f32 %v1192
          %v1449 = vcvt.s32.f32 %v1193
          %v1450 = vcvt.s32.f32 %v1194
          %v1451 = vcvt.s32.f32 %v1195
          %v1452 = vcvt.s32.f32 %v1196
          %v1453 = vcvt.s32.f32 %v1197
          %v1454 = vcvt.s32.f32 %v1198
          %v1455 = vcvt.s32.f32 %v1199
          %v1456 = vcvt.s32.f32 %v1200
          %v1457 = vcvt.s32.f32 %v1201
          %v1458 = vcvt.s32.f32 %v1202
          %v1459 = vcvt.s32.f32 %v1203
          %v1460 = vcvt.s32.f32 %v1204
          %v1461 = vcvt.s32.f32 %v1205
          %v1462 = vcvt.s32.f32 %v1206
          %v1463 = vcvt.s32.f32 %v1207
          %v1464 = vcvt.s32.f32 %v1208
          %v1465 = vcvt.s32.f32 %v1209
          %v1466 = vcvt.s32.f32 %v1210
          %v1467 = vcvt.s32.f32 %v1211
          %v1468 = vcvt.s32.f32 %v1212
          %v1469 = vcvt.s32.f32 %v1213
          %v1470 = vcvt.s32.f32 %v1214
          %v1471 = vcvt.s32.f32 %v1215
          %v1472 = vcvt.s32.f32 %v1216
          %v1473 = vcvt.s32.f32 %v1217
          %v1474 = vcvt.s32.f32 %v1218
          %v1475 = vcvt.s32.f32 %v1219
          %v1476 = vcvt.s32.f32 %v1220
          %v1477 = vcvt.s32.f32 %v1221
          %v1478 = vcvt.s32.f32 %v1222
          %v1479 = vcvt.s32.f32 %v1223
          %v1480 = vcvt.s32.f32 %v1224
          %v1481 = vcvt.s32.f32 %v1225
          %v1482 = vcvt.s32.f32 %v1226
          %v1483 = vcvt.s32.f32 %v1227
          %v1484 = vcvt.s32.f32 %v1228
          %v1485 = vcvt.s32.f32 %v1229
          %v1486 = vcvt.s32.f32 %v1230
          %v1487 = vcvt.s32.f32 %v1231
          %v1488 = vcvt.s32.f32 %v1232
          %v1489 = vcvt.s32.f32 %v1233
          %v1490 = vcvt.s32.f32 %v1234
          %v1491 = vcvt.s32.f32 %v1235
          %v1492 = vcvt.s32.f32 %v1236
          %v1493 = vcvt.s32.f32 %v1237
          %v1494 = vcvt.s32.f32 %v1238
          %v1495 = vcvt.s32.f32 %v1239
          %v1496 = vcvt.s32.f32 %v1240
          %v1497 = vcvt.s32.f32 %v1241
          %v1498 = vcvt.s32.f32 %v1242
          %v1499 = vcvt.s32.f32 %v1243
          %v1500 = vcvt.s32.f32 %v1244
          %v1501 = vcvt.s32.f32 %v1245
          %v1502 = vcvt.s32.f32 %v1246
          %v1503 = vcvt.s32.f32 %v1247
          %v1504 = vcvt.s32.f32 %v1248
          %v1505 = vcvt.s32.f32 %v1249
          %v1506 = vcvt.s32.f32 %v1250
          %v1507 = vcvt.s32.f32 %v1251
          %v1508 = vcvt.s32.f32 %v1252
          %v1509 = vcvt.s32.f32 %v1253
          %v1510 = vcvt.s32.f32 %v1254
          %v1511 = vcvt.s32.f32 %v1255
          %v1512 = vcvt.s32.f32 %v1256
          %v1513 = vcvt.s32.f32 %v1257
          %v1514 = vcvt.s32.f32 %v1258
          %v1515 = vcvt.s32.f32 %v1259
          %v1516 = vcvt.s32.f32 %v1260
          %v1517 = vcvt.s32.f32 %v1261
          %v1518 = vcvt.s32.f32 %v1262
          %v1519 = vcvt.s32.f32 %v1263
          %v1520 = vcvt.s32.f32 %v1264
          %v1521 = vcvt.s32.f32 %v1265
          %v1522 = vcvt.s32.f32 %v1266
          %v1523 = vcvt.s32.f32 %v1267
          %v1524 = vcvt.s32.f32 %v1268
          %v1525 = vcvt.s32.f32 %v1269
          %v1526 = vcvt.s32.f32 %v1270
          %v1527 = vcvt.s32.f32 %v1271
          %v1528 = vcvt.s32.f32 %v1272
          %v1529 = vcvt.s32.f32 %v1273
          %v1530 = vcvt.s32.f32 %v1274
          %v1531 = vcvt.s32.f32 %v1275
          %v1532 = vcvt.s32.f32 %v1276
          %v1533 = vcvt.s32.f32 %v1277
          %v1534 = vcvt.s32.f32 %v1278
          %v1535 = vcvt.s32.f32 %v1279
          %v1536 = vcvt.s32.f32 %v1280
          %v1537 = vcvt.s32.f32 %v1281
          %v1538 = vcvt.s32.f32 %v1282
          %v1539 = vcvt.s32.f32 %v1283
          %v1540 = vcvt.s32.f32 %v1284
          %v1541 = vcvt.s32.f32 %v1285
          %v1542 = vcvt.s32.f32 %v1286
          %v1543 = vcvt.s32.f32 %v1287
          %v1544 = vcvt.s32.f32 %v1288
          %v1545 = vcvt.s32.f32 %v1289
          %v1546 = vcvt.s32.f32 %v1290
          %v1547 = vcvt.s32.f32 %v1291
          %v1548 = vcvt.s32.f32 %v1292
          %v1549 = vcvt.s32.f32 %v1293
          %v1550 = vcvt.s32.f32 %v1294
          %v1551 = vcvt.s32.f32 %v1295
          %v1552 = vcvt.s32.f32 %v1296
          %v1553 = vcvt.s32.f32 %v1297
          %v1554 = vcvt.s32.f32 %v1298
          %v1555 = vcvt.s32.f32 %v1299
          %v1556 = vcvt.s32.f32 %v1300
          %v1557 = vcvt.s32.f32 %v1301
          %v1558 = vcvt.s32.f32 %v1302
          %v1559 = vcvt.s32.f32 %v1303
          %v1560 = vcvt.s32.f32 %v1304
          %v1561 = vcvt.s32.f32 %v1305
          %v1562 = vcvt.s32.f32 %v1306
          %v1563 = vcvt.s32.f32 %v1307
          %v1564 = vcvt.s32.f32 %v1308
          %v1565 = vcvt.s32.f32 %v1309
          %v1566 = vcvt.s32.f32 %v1310
          %v1567 = vcvt.s32.f32 %v1311
          %v1568 = vcvt.s32.f32 %v1312
          %v1569 = vcvt.s32.f32 %v1313
          %v1570 = vcvt.s32.f32 %v1314
          %v1571 = vcvt.s32.f32 %v1315
          %v1572 = vcvt.s32.f32 %v1316
          %v1573 = vpack.c.bf16 %v1321, %v1317
          %v1574 = vpack.c.bf16 %v1322, %v1318
          %v1575 = vpack.c.bf16 %v1323, %v1319
          %v1576 = vpack.c.bf16 %v1324, %v1320
          %v1577 = vpack.c.bf16 %v1329, %v1325
          %v1578 = vpack.c.bf16 %v1330, %v1326
          %v1579 = vpack.c.bf16 %v1331, %v1327
          %v1580 = vpack.c.bf16 %v1332, %v1328
          %v1581 = vpack.c.bf16 %v1337, %v1333
          %v1582 = vpack.c.bf16 %v1338, %v1334
          %v1583 = vpack.c.bf16 %v1339, %v1335
          %v1584 = vpack.c.bf16 %v1340, %v1336
          %v1585 = vpack.c.bf16 %v1345, %v1341
          %v1586 = vpack.c.bf16 %v1346, %v1342
          %v1587 = vpack.c.bf16 %v1347, %v1343
          %v1588 = vpack.c.bf16 %v1348, %v1344
          %v1589 = vpack.c.bf16 %v1353, %v1349
          %v1590 = vpack.c.bf16 %v1354, %v1350
          %v1591 = vpack.c.bf16 %v1355, %v1351
          %v1592 = vpack.c.bf16 %v1356, %v1352
          %v1593 = vpack.c.bf16 %v1361, %v1357
          %v1594 = vpack.c.bf16 %v1362, %v1358
          %v1595 = vpack.c.bf16 %v1363, %v1359
          %v1596 = vpack.c.bf16 %v1364, %v1360
          %v1597 = vpack.c.bf16 %v1369, %v1365
          %v1598 = vpack.c.bf16 %v1370, %v1366
          %v1599 = vpack.c.bf16 %v1371, %v1367
          %v1600 = vpack.c.bf16 %v1372, %v1368
          %v1601 = vpack.c.bf16 %v1377, %v1373
          %v1602 = vpack.c.bf16 %v1378, %v1374
          %v1603 = vpack.c.bf16 %v1379, %v1375
          %v1604 = vpack.c.bf16 %v1380, %v1376
          %v1605 = vpack.c.bf16 %v1385, %v1381
          %v1606 = vpack.c.bf16 %v1386, %v1382
          %v1607 = vpack.c.bf16 %v1387, %v1383
          %v1608 = vpack.c.bf16 %v1388, %v1384
          %v1609 = vpack.c.bf16 %v1393, %v1389
          %v1610 = vpack.c.bf16 %v1394, %v1390
          %v1611 = vpack.c.bf16 %v1395, %v1391
          %v1612 = vpack.c.bf16 %v1396, %v1392
          %v1613 = vpack.c.bf16 %v1401, %v1397
          %v1614 = vpack.c.bf16 %v1402, %v1398
          %v1615 = vpack.c.bf16 %v1403, %v1399
          %v1616 = vpack.c.bf16 %v1404, %v1400
          %v1617 = vpack.c.bf16 %v1409, %v1405
          %v1618 = vpack.c.bf16 %v1410, %v1406
          %v1619 = vpack.c.bf16 %v1411, %v1407
          %v1620 = vpack.c.bf16 %v1412, %v1408
          %v1621 = vpack.c.bf16 %v1417, %v1413
          %v1622 = vpack.c.bf16 %v1418, %v1414
          %v1623 = vpack.c.bf16 %v1419, %v1415
          %v1624 = vpack.c.bf16 %v1420, %v1416
          %v1625 = vpack.c.bf16 %v1425, %v1421
          %v1626 = vpack.c.bf16 %v1426, %v1422
          %v1627 = vpack.c.bf16 %v1427, %v1423
          %v1628 = vpack.c.bf16 %v1428, %v1424
          %v1629 = vpack.c.bf16 %v1433, %v1429
          %v1630 = vpack.c.bf16 %v1434, %v1430
          %v1631 = vpack.c.bf16 %v1435, %v1431
          %v1632 = vpack.c.bf16 %v1436, %v1432
          %v1633 = vpack.c.bf16 %v1441, %v1437
          %v1634 = vpack.c.bf16 %v1442, %v1438
          %v1635 = vpack.c.bf16 %v1443, %v1439
          %v1636 = vpack.c.bf16 %v1444, %v1440
          %v1637 = vpack.c.bf16 %v1449, %v1445
          %v1638 = vpack.c.bf16 %v1450, %v1446
          %v1639 = vpack.c.bf16 %v1451, %v1447
          %v1640 = vpack.c.bf16 %v1452, %v1448
          %v1641 = vpack.c.bf16 %v1457, %v1453
          %v1642 = vpack.c.bf16 %v1458, %v1454
          %v1643 = vpack.c.bf16 %v1459, %v1455
          %v1644 = vpack.c.bf16 %v1460, %v1456
          %v1645 = vpack.c.bf16 %v1465, %v1461
          %v1646 = vpack.c.bf16 %v1466, %v1462
          %v1647 = vpack.c.bf16 %v1467, %v1463
          %v1648 = vpack.c.bf16 %v1468, %v1464
          %v1649 = vpack.c.bf16 %v1473, %v1469
          %v1650 = vpack.c.bf16 %v1474, %v1470
          %v1651 = vpack.c.bf16 %v1475, %v1471
          %v1652 = vpack.c.bf16 %v1476, %v1472
          %v1653 = vpack.c.bf16 %v1481, %v1477
          %v1654 = vpack.c.bf16 %v1482, %v1478
          %v1655 = vpack.c.bf16 %v1483, %v1479
          %v1656 = vpack.c.bf16 %v1484, %v1480
          %v1657 = vpack.c.bf16 %v1489, %v1485
          %v1658 = vpack.c.bf16 %v1490, %v1486
          %v1659 = vpack.c.bf16 %v1491, %v1487
          %v1660 = vpack.c.bf16 %v1492, %v1488
          %v1661 = vpack.c.bf16 %v1497, %v1493
          %v1662 = vpack.c.bf16 %v1498, %v1494
          %v1663 = vpack.c.bf16 %v1499, %v1495
          %v1664 = vpack.c.bf16 %v1500, %v1496
          %v1665 = vpack.c.bf16 %v1505, %v1501
          %v1666 = vpack.c.bf16 %v1506, %v1502
          %v1667 = vpack.c.bf16 %v1507, %v1503
          %v1668 = vpack.c.bf16 %v1508, %v1504
          %v1669 = vpack.c.bf16 %v1513, %v1509
          %v1670 = vpack.c.bf16 %v1514, %v1510
          %v1671 = vpack.c.bf16 %v1515, %v1511
          %v1672 = vpack.c.bf16 %v1516, %v1512
          %v1673 = vpack.c.bf16 %v1521, %v1517
          %v1674 = vpack.c.bf16 %v1522, %v1518
          %v1675 = vpack.c.bf16 %v1523, %v1519
          %v1676 = vpack.c.bf16 %v1524, %v1520
          %v1677 = vpack.c.bf16 %v1529, %v1525
          %v1678 = vpack.c.bf16 %v1530, %v1526
          %v1679 = vpack.c.bf16 %v1531, %v1527
          %v1680 = vpack.c.bf16 %v1532, %v1528
          %v1681 = vpack.c.bf16 %v1537, %v1533
          %v1682 = vpack.c.bf16 %v1538, %v1534
          %v1683 = vpack.c.bf16 %v1539, %v1535
          %v1684 = vpack.c.bf16 %v1540, %v1536
          %v1685 = vpack.c.bf16 %v1545, %v1541
          %v1686 = vpack.c.bf16 %v1546, %v1542
          %v1687 = vpack.c.bf16 %v1547, %v1543
          %v1688 = vpack.c.bf16 %v1548, %v1544
          %v1689 = vpack.c.bf16 %v1553, %v1549
          %v1690 = vpack.c.bf16 %v1554, %v1550
          %v1691 = vpack.c.bf16 %v1555, %v1551
          %v1692 = vpack.c.bf16 %v1556, %v1552
          %v1693 = vpack.c.bf16 %v1561, %v1557
          %v1694 = vpack.c.bf16 %v1562, %v1558
          %v1695 = vpack.c.bf16 %v1563, %v1559
          %v1696 = vpack.c.bf16 %v1564, %v1560
          %v1697 = vpack.c.bf16 %v1569, %v1565
          %v1698 = vpack.c.bf16 %v1570, %v1566
          %v1699 = vpack.c.bf16 %v1571, %v1567
          %v1700 = vpack.c.bf16 %v1572, %v1568
          %v1701 = vld [vmem:[%s289] sm:$0xff]
          %v1702 = vld [vmem:[%s289 + $0x8] sm:$0xff]
          %v1703 = vld [vmem:[%s289 + $0x10] sm:$0xff]
          %v1704 = vld [vmem:[%s289 + $0x18] sm:$0xff]
          %v1705 = vld [vmem:[%s289 + $0x20] sm:$0xff]
          %v1706 = vld [vmem:[%s289 + $0x28] sm:$0xff]
          %v1707 = vld [vmem:[%s289 + $0x30] sm:$0xff]
          %v1708 = vld [vmem:[%s289 + $0x38] sm:$0xff]
          %v1709 = vld [vmem:[%s289 + $0x40] sm:$0xff]
          %v1710 = vld [vmem:[%s289 + $0x48] sm:$0xff]
          %v1711 = vld [vmem:[%s289 + $0x50] sm:$0xff]
          %v1712 = vld [vmem:[%s289 + $0x58] sm:$0xff]
          %v1713 = vld [vmem:[%s289 + $0x60] sm:$0xff]
          %v1714 = vld [vmem:[%s289 + $0x68] sm:$0xff]
          %v1715 = vld [vmem:[%s289 + $0x70] sm:$0xff]
          %v1716 = vld [vmem:[%s289 + $0x78] sm:$0xff]
          %v1717 = vld [vmem:[%s289 + $0x80] sm:$0xff]
          %v1718 = vld [vmem:[%s289 + $0x88] sm:$0xff]
          %v1719 = vld [vmem:[%s289 + $0x90] sm:$0xff]
          %v1720 = vld [vmem:[%s289 + $0x98] sm:$0xff]
          %v1721 = vld [vmem:[%s289 + $0xa0] sm:$0xff]
          %v1722 = vld [vmem:[%s289 + $0xa8] sm:$0xff]
          %v1723 = vld [vmem:[%s289 + $0xb0] sm:$0xff]
          %v1724 = vld [vmem:[%s289 + $0xb8] sm:$0xff]
          %v1725 = vld [vmem:[%s289 + $0xc0] sm:$0xff]
          %v1726 = vld [vmem:[%s289 + $0xc8] sm:$0xff]
          %v1727 = vld [vmem:[%s289 + $0xd0] sm:$0xff]
          %v1728 = vld [vmem:[%s289 + $0xd8] sm:$0xff]
          %v1729 = vld [vmem:[%s289 + $0xe0] sm:$0xff]
          %v1730 = vld [vmem:[%s289 + $0xe8] sm:$0xff]
          %v1731 = vld [vmem:[%s289 + $0xf0] sm:$0xff]
          %v1732 = vld [vmem:[%s289 + $0xf8] sm:$0xff]
          %v1733 = vld [vmem:[%s289 + $0x100] sm:$0xff]
          %v1734 = vld [vmem:[%s289 + $0x108] sm:$0xff]
          %v1735 = vld [vmem:[%s289 + $0x110] sm:$0xff]
          %v1736 = vld [vmem:[%s289 + $0x118] sm:$0xff]
          %v1737 = vld [vmem:[%s289 + $0x120] sm:$0xff]
          %v1738 = vld [vmem:[%s289 + $0x128] sm:$0xff]
          %v1739 = vld [vmem:[%s289 + $0x130] sm:$0xff]
          %v1740 = vld [vmem:[%s289 + $0x138] sm:$0xff]
          %v1741 = vld [vmem:[%s289 + $0x140] sm:$0xff]
          %v1742 = vld [vmem:[%s289 + $0x148] sm:$0xff]
          %v1743 = vld [vmem:[%s289 + $0x150] sm:$0xff]
          %v1744 = vld [vmem:[%s289 + $0x158] sm:$0xff]
          %v1745 = vld [vmem:[%s289 + $0x160] sm:$0xff]
          %v1746 = vld [vmem:[%s289 + $0x168] sm:$0xff]
          %v1747 = vld [vmem:[%s289 + $0x170] sm:$0xff]
          %v1748 = vld [vmem:[%s289 + $0x178] sm:$0xff]
          %v1749 = vld [vmem:[%s289 + $0x180] sm:$0xff]
          %v1750 = vld [vmem:[%s289 + $0x188] sm:$0xff]
          %v1751 = vld [vmem:[%s289 + $0x190] sm:$0xff]
          %v1752 = vld [vmem:[%s289 + $0x198] sm:$0xff]
          %v1753 = vld [vmem:[%s289 + $0x1a0] sm:$0xff]
          %v1754 = vld [vmem:[%s289 + $0x1a8] sm:$0xff]
          %v1755 = vld [vmem:[%s289 + $0x1b0] sm:$0xff]
          %v1756 = vld [vmem:[%s289 + $0x1b8] sm:$0xff]
          %v1757 = vld [vmem:[%s289 + $0x1c0] sm:$0xff]
          %v1758 = vld [vmem:[%s289 + $0x1c8] sm:$0xff]
          %v1759 = vld [vmem:[%s289 + $0x1d0] sm:$0xff]
          %v1760 = vld [vmem:[%s289 + $0x1d8] sm:$0xff]
          %v1761 = vld [vmem:[%s289 + $0x1e0] sm:$0xff]
          %v1762 = vld [vmem:[%s289 + $0x1e8] sm:$0xff]
          %v1763 = vld [vmem:[%s289 + $0x1f0] sm:$0xff]
          %v1764 = vld [vmem:[%s289 + $0x1f8] sm:$0xff]
          %s1765 = smul.u32 %s996, 64
          %s1766 = smul.addr %s1765, 4
          %s1767 = scalar_lea.vmem [#allocation2], %s1766
          %v1768 = vld [vmem:[%s1767] sm:$0xf]
          %v1769 = vld [vmem:[%s1767 + $0x4] sm:$0xf]
          %v1770 = vld [vmem:[%s1767 + $0x8] sm:$0xf]
          %v1771 = vld [vmem:[%s1767 + $0xc] sm:$0xf]
          %v1772 = vld [vmem:[%s1767 + $0x10] sm:$0xf]
          %v1773 = vld [vmem:[%s1767 + $0x14] sm:$0xf]
          %v1774 = vld [vmem:[%s1767 + $0x18] sm:$0xf]
          %v1775 = vld [vmem:[%s1767 + $0x1c] sm:$0xf]
          %v1776 = vld [vmem:[%s1767 + $0x20] sm:$0xf]
          %v1777 = vld [vmem:[%s1767 + $0x24] sm:$0xf]
          %v1778 = vld [vmem:[%s1767 + $0x28] sm:$0xf]
          %v1779 = vld [vmem:[%s1767 + $0x2c] sm:$0xf]
          %v1780 = vld [vmem:[%s1767 + $0x30] sm:$0xf]
          %v1781 = vld [vmem:[%s1767 + $0x34] sm:$0xf]
          %v1782 = vld [vmem:[%s1767 + $0x38] sm:$0xf]
          %v1783 = vld [vmem:[%s1767 + $0x3c] sm:$0xf]
          %v1784 = vld [vmem:[%s1767 + $0x40] sm:$0xf]
          %v1785 = vld [vmem:[%s1767 + $0x44] sm:$0xf]
          %v1786 = vld [vmem:[%s1767 + $0x48] sm:$0xf]
          %v1787 = vld [vmem:[%s1767 + $0x4c] sm:$0xf]
          %v1788 = vld [vmem:[%s1767 + $0x50] sm:$0xf]
          %v1789 = vld [vmem:[%s1767 + $0x54] sm:$0xf]
          %v1790 = vld [vmem:[%s1767 + $0x58] sm:$0xf]
          %v1791 = vld [vmem:[%s1767 + $0x5c] sm:$0xf]
          %v1792 = vld [vmem:[%s1767 + $0x60] sm:$0xf]
          %v1793 = vld [vmem:[%s1767 + $0x64] sm:$0xf]
          %v1794 = vld [vmem:[%s1767 + $0x68] sm:$0xf]
          %v1795 = vld [vmem:[%s1767 + $0x6c] sm:$0xf]
          %v1796 = vld [vmem:[%s1767 + $0x70] sm:$0xf]
          %v1797 = vld [vmem:[%s1767 + $0x74] sm:$0xf]
          %v1798 = vld [vmem:[%s1767 + $0x78] sm:$0xf]
          %v1799 = vld [vmem:[%s1767 + $0x7c] sm:$0xf]
          %v1800 = vld [vmem:[%s1767 + $0x80] sm:$0xf]
          %v1801 = vld [vmem:[%s1767 + $0x84] sm:$0xf]
          %v1802 = vld [vmem:[%s1767 + $0x88] sm:$0xf]
          %v1803 = vld [vmem:[%s1767 + $0x8c] sm:$0xf]
          %v1804 = vld [vmem:[%s1767 + $0x90] sm:$0xf]
          %v1805 = vld [vmem:[%s1767 + $0x94] sm:$0xf]
          %v1806 = vld [vmem:[%s1767 + $0x98] sm:$0xf]
          %v1807 = vld [vmem:[%s1767 + $0x9c] sm:$0xf]
          %v1808 = vld [vmem:[%s1767 + $0xa0] sm:$0xf]
          %v1809 = vld [vmem:[%s1767 + $0xa4] sm:$0xf]
          %v1810 = vld [vmem:[%s1767 + $0xa8] sm:$0xf]
          %v1811 = vld [vmem:[%s1767 + $0xac] sm:$0xf]
          %v1812 = vld [vmem:[%s1767 + $0xb0] sm:$0xf]
          %v1813 = vld [vmem:[%s1767 + $0xb4] sm:$0xf]
          %v1814 = vld [vmem:[%s1767 + $0xb8] sm:$0xf]
          %v1815 = vld [vmem:[%s1767 + $0xbc] sm:$0xf]
          %v1816 = vld [vmem:[%s1767 + $0xc0] sm:$0xf]
          %v1817 = vld [vmem:[%s1767 + $0xc4] sm:$0xf]
          %v1818 = vld [vmem:[%s1767 + $0xc8] sm:$0xf]
          %v1819 = vld [vmem:[%s1767 + $0xcc] sm:$0xf]
          %v1820 = vld [vmem:[%s1767 + $0xd0] sm:$0xf]
          %v1821 = vld [vmem:[%s1767 + $0xd4] sm:$0xf]
          %v1822 = vld [vmem:[%s1767 + $0xd8] sm:$0xf]
          %v1823 = vld [vmem:[%s1767 + $0xdc] sm:$0xf]
          %v1824 = vld [vmem:[%s1767 + $0xe0] sm:$0xf]
          %v1825 = vld [vmem:[%s1767 + $0xe4] sm:$0xf]
          %v1826 = vld [vmem:[%s1767 + $0xe8] sm:$0xf]
          %v1827 = vld [vmem:[%s1767 + $0xec] sm:$0xf]
          %v1828 = vld [vmem:[%s1767 + $0xf0] sm:$0xf]
          %v1829 = vld [vmem:[%s1767 + $0xf4] sm:$0xf]
          %v1830 = vld [vmem:[%s1767 + $0xf8] sm:$0xf]
          %v1831 = vld [vmem:[%s1767 + $0xfc] sm:$0xf]
          %v1896 = vunpack.c.l.b16 %v1768
          %v1897 = vunpack.c.l.b16 %v1769
          %v1898 = vunpack.c.l.b16 %v1770
          %v1899 = vunpack.c.l.b16 %v1771
          %v1900 = vunpack.c.l.b16 %v1772
          %v1901 = vunpack.c.l.b16 %v1773
          %v1902 = vunpack.c.l.b16 %v1774
          %v1903 = vunpack.c.l.b16 %v1775
          %v1904 = vunpack.c.l.b16 %v1776
          %v1905 = vunpack.c.l.b16 %v1777
          %v1906 = vunpack.c.l.b16 %v1778
          %v1907 = vunpack.c.l.b16 %v1779
          %v1908 = vunpack.c.l.b16 %v1780
          %v1909 = vunpack.c.l.b16 %v1781
          %v1910 = vunpack.c.l.b16 %v1782
          %v1911 = vunpack.c.l.b16 %v1783
          %v1912 = vunpack.c.l.b16 %v1784
          %v1913 = vunpack.c.l.b16 %v1785
          %v1914 = vunpack.c.l.b16 %v1786
          %v1915 = vunpack.c.l.b16 %v1787
          %v1916 = vunpack.c.l.b16 %v1788
          %v1917 = vunpack.c.l.b16 %v1789
          %v1918 = vunpack.c.l.b16 %v1790
          %v1919 = vunpack.c.l.b16 %v1791
          %v1920 = vunpack.c.l.b16 %v1792
          %v1921 = vunpack.c.l.b16 %v1793
          %v1922 = vunpack.c.l.b16 %v1794
          %v1923 = vunpack.c.l.b16 %v1795
          %v1924 = vunpack.c.l.b16 %v1796
          %v1925 = vunpack.c.l.b16 %v1797
          %v1926 = vunpack.c.l.b16 %v1798
          %v1927 = vunpack.c.l.b16 %v1799
          %v1928 = vunpack.c.l.b16 %v1800
          %v1929 = vunpack.c.l.b16 %v1801
          %v1930 = vunpack.c.l.b16 %v1802
          %v1931 = vunpack.c.l.b16 %v1803
          %v1932 = vunpack.c.l.b16 %v1804
          %v1933 = vunpack.c.l.b16 %v1805
          %v1934 = vunpack.c.l.b16 %v1806
          %v1935 = vunpack.c.l.b16 %v1807
          %v1936 = vunpack.c.l.b16 %v1808
          %v1937 = vunpack.c.l.b16 %v1809
          %v1938 = vunpack.c.l.b16 %v1810
          %v1939 = vunpack.c.l.b16 %v1811
          %v1940 = vunpack.c.l.b16 %v1812
          %v1941 = vunpack.c.l.b16 %v1813
          %v1942 = vunpack.c.l.b16 %v1814
          %v1943 = vunpack.c.l.b16 %v1815
          %v1944 = vunpack.c.l.b16 %v1816
          %v1945 = vunpack.c.l.b16 %v1817
          %v1946 = vunpack.c.l.b16 %v1818
          %v1947 = vunpack.c.l.b16 %v1819
          %v1948 = vunpack.c.l.b16 %v1820
          %v1949 = vunpack.c.l.b16 %v1821
          %v1950 = vunpack.c.l.b16 %v1822
          %v1951 = vunpack.c.l.b16 %v1823
          %v1952 = vunpack.c.l.b16 %v1824
          %v1953 = vunpack.c.l.b16 %v1825
          %v1954 = vunpack.c.l.b16 %v1826
          %v1955 = vunpack.c.l.b16 %v1827
          %v1956 = vunpack.c.l.b16 %v1828
          %v1957 = vunpack.c.l.b16 %v1829
          %v1958 = vunpack.c.l.b16 %v1830
          %v1959 = vunpack.c.l.b16 %v1831
          %v1960 = vpack.c.b16 %v1897, %v1896
          %v1961 = vpack.c.b16 %v1899, %v1898
          %v1962 = vpack.c.b16 %v1901, %v1900
          %v1963 = vpack.c.b16 %v1903, %v1902
          %v1964 = vpack.c.b16 %v1905, %v1904
          %v1965 = vpack.c.b16 %v1907, %v1906
          %v1966 = vpack.c.b16 %v1909, %v1908
          %v1967 = vpack.c.b16 %v1911, %v1910
          %v1968 = vpack.c.b16 %v1913, %v1912
          %v1969 = vpack.c.b16 %v1915, %v1914
          %v1970 = vpack.c.b16 %v1917, %v1916
          %v1971 = vpack.c.b16 %v1919, %v1918
          %v1972 = vpack.c.b16 %v1921, %v1920
          %v1973 = vpack.c.b16 %v1923, %v1922
          %v1974 = vpack.c.b16 %v1925, %v1924
          %v1975 = vpack.c.b16 %v1927, %v1926
          %v1976 = vpack.c.b16 %v1929, %v1928
          %v1977 = vpack.c.b16 %v1931, %v1930
          %v1978 = vpack.c.b16 %v1933, %v1932
          %v1979 = vpack.c.b16 %v1935, %v1934
          %v1980 = vpack.c.b16 %v1937, %v1936
          %v1981 = vpack.c.b16 %v1939, %v1938
          %v1982 = vpack.c.b16 %v1941, %v1940
          %v1983 = vpack.c.b16 %v1943, %v1942
          %v1984 = vpack.c.b16 %v1945, %v1944
          %v1985 = vpack.c.b16 %v1947, %v1946
          %v1986 = vpack.c.b16 %v1949, %v1948
          %v1987 = vpack.c.b16 %v1951, %v1950
          %v1988 = vpack.c.b16 %v1953, %v1952
          %v1989 = vpack.c.b16 %v1955, %v1954
          %v1990 = vpack.c.b16 %v1957, %v1956
          %v1991 = vpack.c.b16 %v1959, %v1958
          %2024 = vmatpush.bf16.msra.mxu0 %v1967
          %2025 = vmatpush.bf16.msra.mxu0 %v1966
          %2026 = vmatpush.bf16.msra.mxu0 %v1965
          %2027 = vmatpush.bf16.msra.mxu0 %v1964
          %2028 = vmatpush.bf16.msra.mxu0 %v1963
          %2029 = vmatpush.bf16.msra.mxu0 %v1962
          %2030 = vmatpush.bf16.msra.mxu0 %v1961
          %2031 = vmatpush.bf16.msra.mxu0 %v1960
          %2032 = vmatmul.bf16.gmra.mxu0 %v1573
          %v2033 = vpop.f32.mrf.mxu0
          %v2034 = vadd.f32 0.0, %v2033
          %v2035 = vpop.f32.mrf.mxu0
          %v2036 = vadd.f32 0.0, %v2035
          %2037 = vmatmul.bf16.gmra.mxu0 %v1577
          %v2038 = vpop.f32.mrf.mxu0
          %v2039 = vadd.f32 0.0, %v2038
          %v2040 = vpop.f32.mrf.mxu0
          %v2041 = vadd.f32 0.0, %v2040
          %2042 = vmatmul.bf16.gmra.mxu0 %v1581
          %v2043 = vpop.f32.mrf.mxu0
          %v2044 = vadd.f32 0.0, %v2043
          %v2045 = vpop.f32.mrf.mxu0
          %v2046 = vadd.f32 0.0, %v2045
          %2047 = vmatmul.bf16.gmra.mxu0 %v1585
          %v2048 = vpop.f32.mrf.mxu0
          %v2049 = vadd.f32 0.0, %v2048
          %v2050 = vpop.f32.mrf.mxu0
          %v2051 = vadd.f32 0.0, %v2050
          %2052 = vmatmul.bf16.gmra.mxu0 %v1589
          %v2053 = vpop.f32.mrf.mxu0
          %v2054 = vadd.f32 0.0, %v2053
          %v2055 = vpop.f32.mrf.mxu0
          %v2056 = vadd.f32 0.0, %v2055
          %2057 = vmatmul.bf16.gmra.mxu0 %v1593
          %v2058 = vpop.f32.mrf.mxu0
          %v2059 = vadd.f32 0.0, %v2058
          %v2060 = vpop.f32.mrf.mxu0
          %v2061 = vadd.f32 0.0, %v2060
          %2062 = vmatmul.bf16.gmra.mxu0 %v1597
          %v2063 = vpop.f32.mrf.mxu0
          %v2064 = vadd.f32 0.0, %v2063
          %v2065 = vpop.f32.mrf.mxu0
          %v2066 = vadd.f32 0.0, %v2065
          %2067 = vmatmul.bf16.gmra.mxu0 %v1601
          %v2068 = vpop.f32.mrf.mxu0
          %v2069 = vadd.f32 0.0, %v2068
          %v2070 = vpop.f32.mrf.mxu0
          %v2071 = vadd.f32 0.0, %v2070
          %2072 = vmatmul.bf16.gmra.mxu0 %v1605
          %v2073 = vpop.f32.mrf.mxu0
          %v2074 = vadd.f32 0.0, %v2073
          %v2075 = vpop.f32.mrf.mxu0
          %v2076 = vadd.f32 0.0, %v2075
          %2077 = vmatmul.bf16.gmra.mxu0 %v1609
          %v2078 = vpop.f32.mrf.mxu0
          %v2079 = vadd.f32 0.0, %v2078
          %v2080 = vpop.f32.mrf.mxu0
          %v2081 = vadd.f32 0.0, %v2080
          %2082 = vmatmul.bf16.gmra.mxu0 %v1613
          %v2083 = vpop.f32.mrf.mxu0
          %v2084 = vadd.f32 0.0, %v2083
          %v2085 = vpop.f32.mrf.mxu0
          %v2086 = vadd.f32 0.0, %v2085
          %2087 = vmatmul.bf16.gmra.mxu0 %v1617
          %v2088 = vpop.f32.mrf.mxu0
          %v2089 = vadd.f32 0.0, %v2088
          %v2090 = vpop.f32.mrf.mxu0
          %v2091 = vadd.f32 0.0, %v2090
          %2092 = vmatmul.bf16.gmra.mxu0 %v1621
          %v2093 = vpop.f32.mrf.mxu0
          %v2094 = vadd.f32 0.0, %v2093
          %v2095 = vpop.f32.mrf.mxu0
          %v2096 = vadd.f32 0.0, %v2095
          %2097 = vmatmul.bf16.gmra.mxu0 %v1625
          %v2098 = vpop.f32.mrf.mxu0
          %v2099 = vadd.f32 0.0, %v2098
          %v2100 = vpop.f32.mrf.mxu0
          %v2101 = vadd.f32 0.0, %v2100
          %2102 = vmatmul.bf16.gmra.mxu0 %v1629
          %v2103 = vpop.f32.mrf.mxu0
          %v2104 = vadd.f32 0.0, %v2103
          %v2105 = vpop.f32.mrf.mxu0
          %v2106 = vadd.f32 0.0, %v2105
          %2107 = vmatmul.bf16.gmra.mxu0 %v1633
          %v2108 = vpop.f32.mrf.mxu0
          %v2109 = vadd.f32 0.0, %v2108
          %v2110 = vpop.f32.mrf.mxu0
          %v2111 = vadd.f32 0.0, %v2110
          %2112 = vmatmul.bf16.gmra.mxu0 %v1637
          %v2113 = vpop.f32.mrf.mxu0
          %v2114 = vadd.f32 0.0, %v2113
          %v2115 = vpop.f32.mrf.mxu0
          %v2116 = vadd.f32 0.0, %v2115
          %2117 = vmatmul.bf16.gmra.mxu0 %v1641
          %v2118 = vpop.f32.mrf.mxu0
          %v2119 = vadd.f32 0.0, %v2118
          %v2120 = vpop.f32.mrf.mxu0
          %v2121 = vadd.f32 0.0, %v2120
          %2122 = vmatmul.bf16.gmra.mxu0 %v1645
          %v2123 = vpop.f32.mrf.mxu0
          %v2124 = vadd.f32 0.0, %v2123
          %v2125 = vpop.f32.mrf.mxu0
          %v2126 = vadd.f32 0.0, %v2125
          %2127 = vmatmul.bf16.gmra.mxu0 %v1649
          %v2128 = vpop.f32.mrf.mxu0
          %v2129 = vadd.f32 0.0, %v2128
          %v2130 = vpop.f32.mrf.mxu0
          %v2131 = vadd.f32 0.0, %v2130
          %2132 = vmatmul.bf16.gmra.mxu0 %v1653
          %v2133 = vpop.f32.mrf.mxu0
          %v2134 = vadd.f32 0.0, %v2133
          %v2135 = vpop.f32.mrf.mxu0
          %v2136 = vadd.f32 0.0, %v2135
          %2137 = vmatmul.bf16.gmra.mxu0 %v1657
          %v2138 = vpop.f32.mrf.mxu0
          %v2139 = vadd.f32 0.0, %v2138
          %v2140 = vpop.f32.mrf.mxu0
          %v2141 = vadd.f32 0.0, %v2140
          %2142 = vmatmul.bf16.gmra.mxu0 %v1661
          %v2143 = vpop.f32.mrf.mxu0
          %v2144 = vadd.f32 0.0, %v2143
          %v2145 = vpop.f32.mrf.mxu0
          %v2146 = vadd.f32 0.0, %v2145
          %2147 = vmatmul.bf16.gmra.mxu0 %v1665
          %v2148 = vpop.f32.mrf.mxu0
          %v2149 = vadd.f32 0.0, %v2148
          %v2150 = vpop.f32.mrf.mxu0
          %v2151 = vadd.f32 0.0, %v2150
          %2152 = vmatmul.bf16.gmra.mxu0 %v1669
          %v2153 = vpop.f32.mrf.mxu0
          %v2154 = vadd.f32 0.0, %v2153
          %v2155 = vpop.f32.mrf.mxu0
          %v2156 = vadd.f32 0.0, %v2155
          %2157 = vmatmul.bf16.gmra.mxu0 %v1673
          %v2158 = vpop.f32.mrf.mxu0
          %v2159 = vadd.f32 0.0, %v2158
          %v2160 = vpop.f32.mrf.mxu0
          %v2161 = vadd.f32 0.0, %v2160
          %2162 = vmatmul.bf16.gmra.mxu0 %v1677
          %v2163 = vpop.f32.mrf.mxu0
          %v2164 = vadd.f32 0.0, %v2163
          %v2165 = vpop.f32.mrf.mxu0
          %v2166 = vadd.f32 0.0, %v2165
          %2167 = vmatmul.bf16.gmra.mxu0 %v1681
          %v2168 = vpop.f32.mrf.mxu0
          %v2169 = vadd.f32 0.0, %v2168
          %v2170 = vpop.f32.mrf.mxu0
          %v2171 = vadd.f32 0.0, %v2170
          %2172 = vmatmul.bf16.gmra.mxu0 %v1685
          %v2173 = vpop.f32.mrf.mxu0
          %v2174 = vadd.f32 0.0, %v2173
          %v2175 = vpop.f32.mrf.mxu0
          %v2176 = vadd.f32 0.0, %v2175
          %2177 = vmatmul.bf16.gmra.mxu0 %v1689
          %v2178 = vpop.f32.mrf.mxu0
          %v2179 = vadd.f32 0.0, %v2178
          %v2180 = vpop.f32.mrf.mxu0
          %v2181 = vadd.f32 0.0, %v2180
          %2182 = vmatmul.bf16.gmra.mxu0 %v1693
          %v2183 = vpop.f32.mrf.mxu0
          %v2184 = vadd.f32 0.0, %v2183
          %v2185 = vpop.f32.mrf.mxu0
          %v2186 = vadd.f32 0.0, %v2185
          %2187 = vmatmul.bf16.gmra.mxu0 %v1697
          %v2188 = vpop.f32.mrf.mxu0
          %v2189 = vadd.f32 0.0, %v2188
          %v2190 = vpop.f32.mrf.mxu0
          %v2191 = vadd.f32 0.0, %v2190
          %2192 = vdwg.mxu0
          %2193 = vmatpush.bf16.msra.mxu0 %v1975
          %2194 = vmatpush.bf16.msra.mxu0 %v1974
          %2195 = vmatpush.bf16.msra.mxu0 %v1973
          %2196 = vmatpush.bf16.msra.mxu0 %v1972
          %2197 = vmatpush.bf16.msra.mxu0 %v1971
          %2198 = vmatpush.bf16.msra.mxu0 %v1970
          %2199 = vmatpush.bf16.msra.mxu0 %v1969
          %2200 = vmatpush.bf16.msra.mxu0 %v1968
          %2201 = vmatmul.bf16.gmra.mxu0 %v1574
          %v2202 = vpop.f32.mrf.mxu0
          %v2203 = vadd.f32 %v2034, %v2202
          %v2204 = vpop.f32.mrf.mxu0
          %v2205 = vadd.f32 %v2036, %v2204
          %2206 = vmatmul.bf16.gmra.mxu0 %v1578
          %v2207 = vpop.f32.mrf.mxu0
          %v2208 = vadd.f32 %v2039, %v2207
          %v2209 = vpop.f32.mrf.mxu0
          %v2210 = vadd.f32 %v2041, %v2209
          %2211 = vmatmul.bf16.gmra.mxu0 %v1582
          %v2212 = vpop.f32.mrf.mxu0
          %v2213 = vadd.f32 %v2044, %v2212
          %v2214 = vpop.f32.mrf.mxu0
          %v2215 = vadd.f32 %v2046, %v2214
          %2216 = vmatmul.bf16.gmra.mxu0 %v1586
          %v2217 = vpop.f32.mrf.mxu0
          %v2218 = vadd.f32 %v2049, %v2217
          %v2219 = vpop.f32.mrf.mxu0
          %v2220 = vadd.f32 %v2051, %v2219
          %2221 = vmatmul.bf16.gmra.mxu0 %v1590
          %v2222 = vpop.f32.mrf.mxu0
          %v2223 = vadd.f32 %v2054, %v2222
          %v2224 = vpop.f32.mrf.mxu0
          %v2225 = vadd.f32 %v2056, %v2224
          %2226 = vmatmul.bf16.gmra.mxu0 %v1594
          %v2227 = vpop.f32.mrf.mxu0
          %v2228 = vadd.f32 %v2059, %v2227
          %v2229 = vpop.f32.mrf.mxu0
          %v2230 = vadd.f32 %v2061, %v2229
          %2231 = vmatmul.bf16.gmra.mxu0 %v1598
          %v2232 = vpop.f32.mrf.mxu0
          %v2233 = vadd.f32 %v2064, %v2232
          %v2234 = vpop.f32.mrf.mxu0
          %v2235 = vadd.f32 %v2066, %v2234
          %2236 = vmatmul.bf16.gmra.mxu0 %v1602
          %v2237 = vpop.f32.mrf.mxu0
          %v2238 = vadd.f32 %v2069, %v2237
          %v2239 = vpop.f32.mrf.mxu0
          %v2240 = vadd.f32 %v2071, %v2239
          %2241 = vmatmul.bf16.gmra.mxu0 %v1606
          %v2242 = vpop.f32.mrf.mxu0
          %v2243 = vadd.f32 %v2074, %v2242
          %v2244 = vpop.f32.mrf.mxu0
          %v2245 = vadd.f32 %v2076, %v2244
          %2246 = vmatmul.bf16.gmra.mxu0 %v1610
          %v2247 = vpop.f32.mrf.mxu0
          %v2248 = vadd.f32 %v2079, %v2247
          %v2249 = vpop.f32.mrf.mxu0
          %v2250 = vadd.f32 %v2081, %v2249
          %2251 = vmatmul.bf16.gmra.mxu0 %v1614
          %v2252 = vpop.f32.mrf.mxu0
          %v2253 = vadd.f32 %v2084, %v2252
          %v2254 = vpop.f32.mrf.mxu0
          %v2255 = vadd.f32 %v2086, %v2254
          %2256 = vmatmul.bf16.gmra.mxu0 %v1618
          %v2257 = vpop.f32.mrf.mxu0
          %v2258 = vadd.f32 %v2089, %v2257
          %v2259 = vpop.f32.mrf.mxu0
          %v2260 = vadd.f32 %v2091, %v2259
          %2261 = vmatmul.bf16.gmra.mxu0 %v1622
          %v2262 = vpop.f32.mrf.mxu0
          %v2263 = vadd.f32 %v2094, %v2262
          %v2264 = vpop.f32.mrf.mxu0
          %v2265 = vadd.f32 %v2096, %v2264
          %2266 = vmatmul.bf16.gmra.mxu0 %v1626
          %v2267 = vpop.f32.mrf.mxu0
          %v2268 = vadd.f32 %v2099, %v2267
          %v2269 = vpop.f32.mrf.mxu0
          %v2270 = vadd.f32 %v2101, %v2269
          %2271 = vmatmul.bf16.gmra.mxu0 %v1630
          %v2272 = vpop.f32.mrf.mxu0
          %v2273 = vadd.f32 %v2104, %v2272
          %v2274 = vpop.f32.mrf.mxu0
          %v2275 = vadd.f32 %v2106, %v2274
          %2276 = vmatmul.bf16.gmra.mxu0 %v1634
          %v2277 = vpop.f32.mrf.mxu0
          %v2278 = vadd.f32 %v2109, %v2277
          %v2279 = vpop.f32.mrf.mxu0
          %v2280 = vadd.f32 %v2111, %v2279
          %2281 = vmatmul.bf16.gmra.mxu0 %v1638
          %v2282 = vpop.f32.mrf.mxu0
          %v2283 = vadd.f32 %v2114, %v2282
          %v2284 = vpop.f32.mrf.mxu0
          %v2285 = vadd.f32 %v2116, %v2284
          %2286 = vmatmul.bf16.gmra.mxu0 %v1642
          %v2287 = vpop.f32.mrf.mxu0
          %v2288 = vadd.f32 %v2119, %v2287
          %v2289 = vpop.f32.mrf.mxu0
          %v2290 = vadd.f32 %v2121, %v2289
          %2291 = vmatmul.bf16.gmra.mxu0 %v1646
          %v2292 = vpop.f32.mrf.mxu0
          %v2293 = vadd.f32 %v2124, %v2292
          %v2294 = vpop.f32.mrf.mxu0
          %v2295 = vadd.f32 %v2126, %v2294
          %2296 = vmatmul.bf16.gmra.mxu0 %v1650
          %v2297 = vpop.f32.mrf.mxu0
          %v2298 = vadd.f32 %v2129, %v2297
          %v2299 = vpop.f32.mrf.mxu0
          %v2300 = vadd.f32 %v2131, %v2299
          %2301 = vmatmul.bf16.gmra.mxu0 %v1654
          %v2302 = vpop.f32.mrf.mxu0
          %v2303 = vadd.f32 %v2134, %v2302
          %v2304 = vpop.f32.mrf.mxu0
          %v2305 = vadd.f32 %v2136, %v2304
          %2306 = vmatmul.bf16.gmra.mxu0 %v1658
          %v2307 = vpop.f32.mrf.mxu0
          %v2308 = vadd.f32 %v2139, %v2307
          %v2309 = vpop.f32.mrf.mxu0
          %v2310 = vadd.f32 %v2141, %v2309
          %2311 = vmatmul.bf16.gmra.mxu0 %v1662
          %v2312 = vpop.f32.mrf.mxu0
          %v2313 = vadd.f32 %v2144, %v2312
          %v2314 = vpop.f32.mrf.mxu0
          %v2315 = vadd.f32 %v2146, %v2314
          %2316 = vmatmul.bf16.gmra.mxu0 %v1666
          %v2317 = vpop.f32.mrf.mxu0
          %v2318 = vadd.f32 %v2149, %v2317
          %v2319 = vpop.f32.mrf.mxu0
          %v2320 = vadd.f32 %v2151, %v2319
          %2321 = vmatmul.bf16.gmra.mxu0 %v1670
          %v2322 = vpop.f32.mrf.mxu0
          %v2323 = vadd.f32 %v2154, %v2322
          %v2324 = vpop.f32.mrf.mxu0
          %v2325 = vadd.f32 %v2156, %v2324
          %2326 = vmatmul.bf16.gmra.mxu0 %v1674
          %v2327 = vpop.f32.mrf.mxu0
          %v2328 = vadd.f32 %v2159, %v2327
          %v2329 = vpop.f32.mrf.mxu0
          %v2330 = vadd.f32 %v2161, %v2329
          %2331 = vmatmul.bf16.gmra.mxu0 %v1678
          %v2332 = vpop.f32.mrf.mxu0
          %v2333 = vadd.f32 %v2164, %v2332
          %v2334 = vpop.f32.mrf.mxu0
          %v2335 = vadd.f32 %v2166, %v2334
          %2336 = vmatmul.bf16.gmra.mxu0 %v1682
          %v2337 = vpop.f32.mrf.mxu0
          %v2338 = vadd.f32 %v2169, %v2337
          %v2339 = vpop.f32.mrf.mxu0
          %v2340 = vadd.f32 %v2171, %v2339
          %2341 = vmatmul.bf16.gmra.mxu0 %v1686
          %v2342 = vpop.f32.mrf.mxu0
          %v2343 = vadd.f32 %v2174, %v2342
          %v2344 = vpop.f32.mrf.mxu0
          %v2345 = vadd.f32 %v2176, %v2344
          %2346 = vmatmul.bf16.gmra.mxu0 %v1690
          %v2347 = vpop.f32.mrf.mxu0
          %v2348 = vadd.f32 %v2179, %v2347
          %v2349 = vpop.f32.mrf.mxu0
          %v2350 = vadd.f32 %v2181, %v2349
          %2351 = vmatmul.bf16.gmra.mxu0 %v1694
          %v2352 = vpop.f32.mrf.mxu0
          %v2353 = vadd.f32 %v2184, %v2352
          %v2354 = vpop.f32.mrf.mxu0
          %v2355 = vadd.f32 %v2186, %v2354
          %2356 = vmatmul.bf16.gmra.mxu0 %v1698
          %v2357 = vpop.f32.mrf.mxu0
          %v2358 = vadd.f32 %v2189, %v2357
          %v2359 = vpop.f32.mrf.mxu0
          %v2360 = vadd.f32 %v2191, %v2359
          %2361 = vdwg.mxu0
          %2362 = vmatpush.bf16.msra.mxu0 %v1983
          %2363 = vmatpush.bf16.msra.mxu0 %v1982
          %2364 = vmatpush.bf16.msra.mxu0 %v1981
          %2365 = vmatpush.bf16.msra.mxu0 %v1980
          %2366 = vmatpush.bf16.msra.mxu0 %v1979
          %2367 = vmatpush.bf16.msra.mxu0 %v1978
          %2368 = vmatpush.bf16.msra.mxu0 %v1977
          %2369 = vmatpush.bf16.msra.mxu0 %v1976
          %2370 = vmatmul.bf16.gmra.mxu0 %v1575
          %v2371 = vpop.f32.mrf.mxu0
          %v2372 = vadd.f32 %v2203, %v2371
          %v2373 = vpop.f32.mrf.mxu0
          %v2374 = vadd.f32 %v2205, %v2373
          %2375 = vmatmul.bf16.gmra.mxu0 %v1579
          %v2376 = vpop.f32.mrf.mxu0
          %v2377 = vadd.f32 %v2208, %v2376
          %v2378 = vpop.f32.mrf.mxu0
          %v2379 = vadd.f32 %v2210, %v2378
          %2380 = vmatmul.bf16.gmra.mxu0 %v1583
          %v2381 = vpop.f32.mrf.mxu0
          %v2382 = vadd.f32 %v2213, %v2381
          %v2383 = vpop.f32.mrf.mxu0
          %v2384 = vadd.f32 %v2215, %v2383
          %2385 = vmatmul.bf16.gmra.mxu0 %v1587
          %v2386 = vpop.f32.mrf.mxu0
          %v2387 = vadd.f32 %v2218, %v2386
          %v2388 = vpop.f32.mrf.mxu0
          %v2389 = vadd.f32 %v2220, %v2388
          %2390 = vmatmul.bf16.gmra.mxu0 %v1591
          %v2391 = vpop.f32.mrf.mxu0
          %v2392 = vadd.f32 %v2223, %v2391
          %v2393 = vpop.f32.mrf.mxu0
          %v2394 = vadd.f32 %v2225, %v2393
          %2395 = vmatmul.bf16.gmra.mxu0 %v1595
          %v2396 = vpop.f32.mrf.mxu0
          %v2397 = vadd.f32 %v2228, %v2396
          %v2398 = vpop.f32.mrf.mxu0
          %v2399 = vadd.f32 %v2230, %v2398
          %2400 = vmatmul.bf16.gmra.mxu0 %v1599
          %v2401 = vpop.f32.mrf.mxu0
          %v2402 = vadd.f32 %v2233, %v2401
          %v2403 = vpop.f32.mrf.mxu0
          %v2404 = vadd.f32 %v2235, %v2403
          %2405 = vmatmul.bf16.gmra.mxu0 %v1603
          %v2406 = vpop.f32.mrf.mxu0
          %v2407 = vadd.f32 %v2238, %v2406
          %v2408 = vpop.f32.mrf.mxu0
          %v2409 = vadd.f32 %v2240, %v2408
          %2410 = vmatmul.bf16.gmra.mxu0 %v1607
          %v2411 = vpop.f32.mrf.mxu0
          %v2412 = vadd.f32 %v2243, %v2411
          %v2413 = vpop.f32.mrf.mxu0
          %v2414 = vadd.f32 %v2245, %v2413
          %2415 = vmatmul.bf16.gmra.mxu0 %v1611
          %v2416 = vpop.f32.mrf.mxu0
          %v2417 = vadd.f32 %v2248, %v2416
          %v2418 = vpop.f32.mrf.mxu0
          %v2419 = vadd.f32 %v2250, %v2418
          %2420 = vmatmul.bf16.gmra.mxu0 %v1615
          %v2421 = vpop.f32.mrf.mxu0
          %v2422 = vadd.f32 %v2253, %v2421
          %v2423 = vpop.f32.mrf.mxu0
          %v2424 = vadd.f32 %v2255, %v2423
          %2425 = vmatmul.bf16.gmra.mxu0 %v1619
          %v2426 = vpop.f32.mrf.mxu0
          %v2427 = vadd.f32 %v2258, %v2426
          %v2428 = vpop.f32.mrf.mxu0
          %v2429 = vadd.f32 %v2260, %v2428
          %2430 = vmatmul.bf16.gmra.mxu0 %v1623
          %v2431 = vpop.f32.mrf.mxu0
          %v2432 = vadd.f32 %v2263, %v2431
          %v2433 = vpop.f32.mrf.mxu0
          %v2434 = vadd.f32 %v2265, %v2433
          %2435 = vmatmul.bf16.gmra.mxu0 %v1627
          %v2436 = vpop.f32.mrf.mxu0
          %v2437 = vadd.f32 %v2268, %v2436
          %v2438 = vpop.f32.mrf.mxu0
          %v2439 = vadd.f32 %v2270, %v2438
          %2440 = vmatmul.bf16.gmra.mxu0 %v1631
          %v2441 = vpop.f32.mrf.mxu0
          %v2442 = vadd.f32 %v2273, %v2441
          %v2443 = vpop.f32.mrf.mxu0
          %v2444 = vadd.f32 %v2275, %v2443
          %2445 = vmatmul.bf16.gmra.mxu0 %v1635
          %v2446 = vpop.f32.mrf.mxu0
          %v2447 = vadd.f32 %v2278, %v2446
          %v2448 = vpop.f32.mrf.mxu0
          %v2449 = vadd.f32 %v2280, %v2448
          %2450 = vmatmul.bf16.gmra.mxu0 %v1639
          %v2451 = vpop.f32.mrf.mxu0
          %v2452 = vadd.f32 %v2283, %v2451
          %v2453 = vpop.f32.mrf.mxu0
          %v2454 = vadd.f32 %v2285, %v2453
          %2455 = vmatmul.bf16.gmra.mxu0 %v1643
          %v2456 = vpop.f32.mrf.mxu0
          %v2457 = vadd.f32 %v2288, %v2456
          %v2458 = vpop.f32.mrf.mxu0
          %v2459 = vadd.f32 %v2290, %v2458
          %2460 = vmatmul.bf16.gmra.mxu0 %v1647
          %v2461 = vpop.f32.mrf.mxu0
          %v2462 = vadd.f32 %v2293, %v2461
          %v2463 = vpop.f32.mrf.mxu0
          %v2464 = vadd.f32 %v2295, %v2463
          %2465 = vmatmul.bf16.gmra.mxu0 %v1651
          %v2466 = vpop.f32.mrf.mxu0
          %v2467 = vadd.f32 %v2298, %v2466
          %v2468 = vpop.f32.mrf.mxu0
          %v2469 = vadd.f32 %v2300, %v2468
          %2470 = vmatmul.bf16.gmra.mxu0 %v1655
          %v2471 = vpop.f32.mrf.mxu0
          %v2472 = vadd.f32 %v2303, %v2471
          %v2473 = vpop.f32.mrf.mxu0
          %v2474 = vadd.f32 %v2305, %v2473
          %2475 = vmatmul.bf16.gmra.mxu0 %v1659
          %v2476 = vpop.f32.mrf.mxu0
          %v2477 = vadd.f32 %v2308, %v2476
          %v2478 = vpop.f32.mrf.mxu0
          %v2479 = vadd.f32 %v2310, %v2478
          %2480 = vmatmul.bf16.gmra.mxu0 %v1663
          %v2481 = vpop.f32.mrf.mxu0
          %v2482 = vadd.f32 %v2313, %v2481
          %v2483 = vpop.f32.mrf.mxu0
          %v2484 = vadd.f32 %v2315, %v2483
          %2485 = vmatmul.bf16.gmra.mxu0 %v1667
          %v2486 = vpop.f32.mrf.mxu0
          %v2487 = vadd.f32 %v2318, %v2486
          %v2488 = vpop.f32.mrf.mxu0
          %v2489 = vadd.f32 %v2320, %v2488
          %2490 = vmatmul.bf16.gmra.mxu0 %v1671
          %v2491 = vpop.f32.mrf.mxu0
          %v2492 = vadd.f32 %v2323, %v2491
          %v2493 = vpop.f32.mrf.mxu0
          %v2494 = vadd.f32 %v2325, %v2493
          %2495 = vmatmul.bf16.gmra.mxu0 %v1675
          %v2496 = vpop.f32.mrf.mxu0
          %v2497 = vadd.f32 %v2328, %v2496
          %v2498 = vpop.f32.mrf.mxu0
          %v2499 = vadd.f32 %v2330, %v2498
          %2500 = vmatmul.bf16.gmra.mxu0 %v1679
          %v2501 = vpop.f32.mrf.mxu0
          %v2502 = vadd.f32 %v2333, %v2501
          %v2503 = vpop.f32.mrf.mxu0
          %v2504 = vadd.f32 %v2335, %v2503
          %2505 = vmatmul.bf16.gmra.mxu0 %v1683
          %v2506 = vpop.f32.mrf.mxu0
          %v2507 = vadd.f32 %v2338, %v2506
          %v2508 = vpop.f32.mrf.mxu0
          %v2509 = vadd.f32 %v2340, %v2508
          %2510 = vmatmul.bf16.gmra.mxu0 %v1687
          %v2511 = vpop.f32.mrf.mxu0
          %v2512 = vadd.f32 %v2343, %v2511
          %v2513 = vpop.f32.mrf.mxu0
          %v2514 = vadd.f32 %v2345, %v2513
          %2515 = vmatmul.bf16.gmra.mxu0 %v1691
          %v2516 = vpop.f32.mrf.mxu0
          %v2517 = vadd.f32 %v2348, %v2516
          %v2518 = vpop.f32.mrf.mxu0
          %v2519 = vadd.f32 %v2350, %v2518
          %2520 = vmatmul.bf16.gmra.mxu0 %v1695
          %v2521 = vpop.f32.mrf.mxu0
          %v2522 = vadd.f32 %v2353, %v2521
          %v2523 = vpop.f32.mrf.mxu0
          %v2524 = vadd.f32 %v2355, %v2523
          %2525 = vmatmul.bf16.gmra.mxu0 %v1699
          %v2526 = vpop.f32.mrf.mxu0
          %v2527 = vadd.f32 %v2358, %v2526
          %v2528 = vpop.f32.mrf.mxu0
          %v2529 = vadd.f32 %v2360, %v2528
          %2530 = vdwg.mxu0
          %2531 = vmatpush.bf16.msra.mxu0 %v1991
          %2532 = vmatpush.bf16.msra.mxu0 %v1990
          %2533 = vmatpush.bf16.msra.mxu0 %v1989
          %2534 = vmatpush.bf16.msra.mxu0 %v1988
          %2535 = vmatpush.bf16.msra.mxu0 %v1987
          %2536 = vmatpush.bf16.msra.mxu0 %v1986
          %2537 = vmatpush.bf16.msra.mxu0 %v1985
          %2538 = vmatpush.bf16.msra.mxu0 %v1984
          %2539 = vmatmul.bf16.gmra.mxu0 %v1576
          %v2540 = vpop.f32.mrf.mxu0
          %v2541 = vadd.f32 %v2372, %v2540
          %v2542 = vpop.f32.mrf.mxu0
          %v2543 = vadd.f32 %v2374, %v2542
          %2544 = vmatmul.bf16.gmra.mxu0 %v1580
          %v2545 = vpop.f32.mrf.mxu0
          %v2546 = vadd.f32 %v2377, %v2545
          %v2547 = vpop.f32.mrf.mxu0
          %v2548 = vadd.f32 %v2379, %v2547
          %2549 = vmatmul.bf16.gmra.mxu0 %v1584
          %v2550 = vpop.f32.mrf.mxu0
          %v2551 = vadd.f32 %v2382, %v2550
          %v2552 = vpop.f32.mrf.mxu0
          %v2553 = vadd.f32 %v2384, %v2552
          %2554 = vmatmul.bf16.gmra.mxu0 %v1588
          %v2555 = vpop.f32.mrf.mxu0
          %v2556 = vadd.f32 %v2387, %v2555
          %v2557 = vpop.f32.mrf.mxu0
          %v2558 = vadd.f32 %v2389, %v2557
          %2559 = vmatmul.bf16.gmra.mxu0 %v1592
          %v2560 = vpop.f32.mrf.mxu0
          %v2561 = vadd.f32 %v2392, %v2560
          %v2562 = vpop.f32.mrf.mxu0
          %v2563 = vadd.f32 %v2394, %v2562
          %2564 = vmatmul.bf16.gmra.mxu0 %v1596
          %v2565 = vpop.f32.mrf.mxu0
          %v2566 = vadd.f32 %v2397, %v2565
          %v2567 = vpop.f32.mrf.mxu0
          %v2568 = vadd.f32 %v2399, %v2567
          %2569 = vmatmul.bf16.gmra.mxu0 %v1600
          %v2570 = vpop.f32.mrf.mxu0
          %v2571 = vadd.f32 %v2402, %v2570
          %v2572 = vpop.f32.mrf.mxu0
          %v2573 = vadd.f32 %v2404, %v2572
          %2574 = vmatmul.bf16.gmra.mxu0 %v1604
          %v2575 = vpop.f32.mrf.mxu0
          %v2576 = vadd.f32 %v2407, %v2575
          %v2577 = vpop.f32.mrf.mxu0
          %v2578 = vadd.f32 %v2409, %v2577
          %2579 = vmatmul.bf16.gmra.mxu0 %v1608
          %v2580 = vpop.f32.mrf.mxu0
          %v2581 = vadd.f32 %v2412, %v2580
          %v2582 = vpop.f32.mrf.mxu0
          %v2583 = vadd.f32 %v2414, %v2582
          %2584 = vmatmul.bf16.gmra.mxu0 %v1612
          %v2585 = vpop.f32.mrf.mxu0
          %v2586 = vadd.f32 %v2417, %v2585
          %v2587 = vpop.f32.mrf.mxu0
          %v2588 = vadd.f32 %v2419, %v2587
          %2589 = vmatmul.bf16.gmra.mxu0 %v1616
          %v2590 = vpop.f32.mrf.mxu0
          %v2591 = vadd.f32 %v2422, %v2590
          %v2592 = vpop.f32.mrf.mxu0
          %v2593 = vadd.f32 %v2424, %v2592
          %2594 = vmatmul.bf16.gmra.mxu0 %v1620
          %v2595 = vpop.f32.mrf.mxu0
          %v2596 = vadd.f32 %v2427, %v2595
          %v2597 = vpop.f32.mrf.mxu0
          %v2598 = vadd.f32 %v2429, %v2597
          %2599 = vmatmul.bf16.gmra.mxu0 %v1624
          %v2600 = vpop.f32.mrf.mxu0
          %v2601 = vadd.f32 %v2432, %v2600
          %v2602 = vpop.f32.mrf.mxu0
          %v2603 = vadd.f32 %v2434, %v2602
          %2604 = vmatmul.bf16.gmra.mxu0 %v1628
          %v2605 = vpop.f32.mrf.mxu0
          %v2606 = vadd.f32 %v2437, %v2605
          %v2607 = vpop.f32.mrf.mxu0
          %v2608 = vadd.f32 %v2439, %v2607
          %2609 = vmatmul.bf16.gmra.mxu0 %v1632
          %v2610 = vpop.f32.mrf.mxu0
          %v2611 = vadd.f32 %v2442, %v2610
          %v2612 = vpop.f32.mrf.mxu0
          %v2613 = vadd.f32 %v2444, %v2612
          %2614 = vmatmul.bf16.gmra.mxu0 %v1636
          %v2615 = vpop.f32.mrf.mxu0
          %v2616 = vadd.f32 %v2447, %v2615
          %v2617 = vpop.f32.mrf.mxu0
          %v2618 = vadd.f32 %v2449, %v2617
          %2619 = vmatmul.bf16.gmra.mxu0 %v1640
          %v2620 = vpop.f32.mrf.mxu0
          %v2621 = vadd.f32 %v2452, %v2620
          %v2622 = vpop.f32.mrf.mxu0
          %v2623 = vadd.f32 %v2454, %v2622
          %2624 = vmatmul.bf16.gmra.mxu0 %v1644
          %v2625 = vpop.f32.mrf.mxu0
          %v2626 = vadd.f32 %v2457, %v2625
          %v2627 = vpop.f32.mrf.mxu0
          %v2628 = vadd.f32 %v2459, %v2627
          %2629 = vmatmul.bf16.gmra.mxu0 %v1648
          %v2630 = vpop.f32.mrf.mxu0
          %v2631 = vadd.f32 %v2462, %v2630
          %v2632 = vpop.f32.mrf.mxu0
          %v2633 = vadd.f32 %v2464, %v2632
          %2634 = vmatmul.bf16.gmra.mxu0 %v1652
          %v2635 = vpop.f32.mrf.mxu0
          %v2636 = vadd.f32 %v2467, %v2635
          %v2637 = vpop.f32.mrf.mxu0
          %v2638 = vadd.f32 %v2469, %v2637
          %2639 = vmatmul.bf16.gmra.mxu0 %v1656
          %v2640 = vpop.f32.mrf.mxu0
          %v2641 = vadd.f32 %v2472, %v2640
          %v2642 = vpop.f32.mrf.mxu0
          %v2643 = vadd.f32 %v2474, %v2642
          %2644 = vmatmul.bf16.gmra.mxu0 %v1660
          %v2645 = vpop.f32.mrf.mxu0
          %v2646 = vadd.f32 %v2477, %v2645
          %v2647 = vpop.f32.mrf.mxu0
          %v2648 = vadd.f32 %v2479, %v2647
          %2649 = vmatmul.bf16.gmra.mxu0 %v1664
          %v2650 = vpop.f32.mrf.mxu0
          %v2651 = vadd.f32 %v2482, %v2650
          %v2652 = vpop.f32.mrf.mxu0
          %v2653 = vadd.f32 %v2484, %v2652
          %2654 = vmatmul.bf16.gmra.mxu0 %v1668
          %v2655 = vpop.f32.mrf.mxu0
          %v2656 = vadd.f32 %v2487, %v2655
          %v2657 = vpop.f32.mrf.mxu0
          %v2658 = vadd.f32 %v2489, %v2657
          %2659 = vmatmul.bf16.gmra.mxu0 %v1672
          %v2660 = vpop.f32.mrf.mxu0
          %v2661 = vadd.f32 %v2492, %v2660
          %v2662 = vpop.f32.mrf.mxu0
          %v2663 = vadd.f32 %v2494, %v2662
          %2664 = vmatmul.bf16.gmra.mxu0 %v1676
          %v2665 = vpop.f32.mrf.mxu0
          %v2666 = vadd.f32 %v2497, %v2665
          %v2667 = vpop.f32.mrf.mxu0
          %v2668 = vadd.f32 %v2499, %v2667
          %2669 = vmatmul.bf16.gmra.mxu0 %v1680
          %v2670 = vpop.f32.mrf.mxu0
          %v2671 = vadd.f32 %v2502, %v2670
          %v2672 = vpop.f32.mrf.mxu0
          %v2673 = vadd.f32 %v2504, %v2672
          %2674 = vmatmul.bf16.gmra.mxu0 %v1684
          %v2675 = vpop.f32.mrf.mxu0
          %v2676 = vadd.f32 %v2507, %v2675
          %v2677 = vpop.f32.mrf.mxu0
          %v2678 = vadd.f32 %v2509, %v2677
          %2679 = vmatmul.bf16.gmra.mxu0 %v1688
          %v2680 = vpop.f32.mrf.mxu0
          %v2681 = vadd.f32 %v2512, %v2680
          %v2682 = vpop.f32.mrf.mxu0
          %v2683 = vadd.f32 %v2514, %v2682
          %2684 = vmatmul.bf16.gmra.mxu0 %v1692
          %v2685 = vpop.f32.mrf.mxu0
          %v2686 = vadd.f32 %v2517, %v2685
          %v2687 = vpop.f32.mrf.mxu0
          %v2688 = vadd.f32 %v2519, %v2687
          %2689 = vmatmul.bf16.gmra.mxu0 %v1696
          %v2690 = vpop.f32.mrf.mxu0
          %v2691 = vadd.f32 %v2522, %v2690
          %v2692 = vpop.f32.mrf.mxu0
          %v2693 = vadd.f32 %v2524, %v2692
          %2694 = vmatmul.bf16.gmra.mxu0 %v1700
          %v2695 = vpop.f32.mrf.mxu0
          %v2696 = vadd.f32 %v2527, %v2695
          %v2697 = vpop.f32.mrf.mxu0
          %v2698 = vadd.f32 %v2529, %v2697
          %2699 = vdwg.mxu0
          %v2700 = vadd.f32 %v1701, %v2541
          %v2701 = vadd.f32 %v1702, %v2543
          %v2702 = vadd.f32 %v1703, %v2546
          %v2703 = vadd.f32 %v1704, %v2548
          %v2704 = vadd.f32 %v1705, %v2551
          %v2705 = vadd.f32 %v1706, %v2553
          %v2706 = vadd.f32 %v1707, %v2556
          %v2707 = vadd.f32 %v1708, %v2558
          %v2708 = vadd.f32 %v1709, %v2561
          %v2709 = vadd.f32 %v1710, %v2563
          %v2710 = vadd.f32 %v1711, %v2566
          %v2711 = vadd.f32 %v1712, %v2568
          %v2712 = vadd.f32 %v1713, %v2571
          %v2713 = vadd.f32 %v1714, %v2573
          %v2714 = vadd.f32 %v1715, %v2576
          %v2715 = vadd.f32 %v1716, %v2578
          %v2716 = vadd.f32 %v1717, %v2581
          %v2717 = vadd.f32 %v1718, %v2583
          %v2718 = vadd.f32 %v1719, %v2586
          %v2719 = vadd.f32 %v1720, %v2588
          %v2720 = vadd.f32 %v1721, %v2591
          %v2721 = vadd.f32 %v1722, %v2593
          %v2722 = vadd.f32 %v1723, %v2596
          %v2723 = vadd.f32 %v1724, %v2598
          %v2724 = vadd.f32 %v1725, %v2601
          %v2725 = vadd.f32 %v1726, %v2603
          %v2726 = vadd.f32 %v1727, %v2606
          %v2727 = vadd.f32 %v1728, %v2608
          %v2728 = vadd.f32 %v1729, %v2611
          %v2729 = vadd.f32 %v1730, %v2613
          %v2730 = vadd.f32 %v1731, %v2616
          %v2731 = vadd.f32 %v1732, %v2618
          %v2732 = vadd.f32 %v1733, %v2621
          %v2733 = vadd.f32 %v1734, %v2623
          %v2734 = vadd.f32 %v1735, %v2626
          %v2735 = vadd.f32 %v1736, %v2628
          %v2736 = vadd.f32 %v1737, %v2631
          %v2737 = vadd.f32 %v1738, %v2633
          %v2738 = vadd.f32 %v1739, %v2636
          %v2739 = vadd.f32 %v1740, %v2638
          %v2740 = vadd.f32 %v1741, %v2641
          %v2741 = vadd.f32 %v1742, %v2643
          %v2742 = vadd.f32 %v1743, %v2646
          %v2743 = vadd.f32 %v1744, %v2648
          %v2744 = vadd.f32 %v1745, %v2651
          %v2745 = vadd.f32 %v1746, %v2653
          %v2746 = vadd.f32 %v1747, %v2656
          %v2747 = vadd.f32 %v1748, %v2658
          %v2748 = vadd.f32 %v1749, %v2661
          %v2749 = vadd.f32 %v1750, %v2663
          %v2750 = vadd.f32 %v1751, %v2666
          %v2751 = vadd.f32 %v1752, %v2668
          %v2752 = vadd.f32 %v1753, %v2671
          %v2753 = vadd.f32 %v1754, %v2673
          %v2754 = vadd.f32 %v1755, %v2676
          %v2755 = vadd.f32 %v1756, %v2678
          %v2756 = vadd.f32 %v1757, %v2681
          %v2757 = vadd.f32 %v1758, %v2683
          %v2758 = vadd.f32 %v1759, %v2686
          %v2759 = vadd.f32 %v1760, %v2688
          %v2760 = vadd.f32 %v1761, %v2691
          %v2761 = vadd.f32 %v1762, %v2693
          %v2762 = vadd.f32 %v1763, %v2696
          %v2763 = vadd.f32 %v1764, %v2698
          %2764 = vst [vmem:[%s289] sm:$0xff] %v2700
          %2765 = vst [vmem:[%s289 + $0x8] sm:$0xff] %v2701
          %2766 = vst [vmem:[%s289 + $0x10] sm:$0xff] %v2702
          %2767 = vst [vmem:[%s289 + $0x18] sm:$0xff] %v2703
          %2768 = vst [vmem:[%s289 + $0x20] sm:$0xff] %v2704
          %2769 = vst [vmem:[%s289 + $0x28] sm:$0xff] %v2705
          %2770 = vst [vmem:[%s289 + $0x30] sm:$0xff] %v2706
          %2771 = vst [vmem:[%s289 + $0x38] sm:$0xff] %v2707
          %2772 = vst [vmem:[%s289 + $0x40] sm:$0xff] %v2708
          %2773 = vst [vmem:[%s289 + $0x48] sm:$0xff] %v2709
          %2774 = vst [vmem:[%s289 + $0x50] sm:$0xff] %v2710
          %2775 = vst [vmem:[%s289 + $0x58] sm:$0xff] %v2711
          %2776 = vst [vmem:[%s289 + $0x60] sm:$0xff] %v2712
          %2777 = vst [vmem:[%s289 + $0x68] sm:$0xff] %v2713
          %2778 = vst [vmem:[%s289 + $0x70] sm:$0xff] %v2714
          %2779 = vst [vmem:[%s289 + $0x78] sm:$0xff] %v2715
          %2780 = vst [vmem:[%s289 + $0x80] sm:$0xff] %v2716
          %2781 = vst [vmem:[%s289 + $0x88] sm:$0xff] %v2717
          %2782 = vst [vmem:[%s289 + $0x90] sm:$0xff] %v2718
          %2783 = vst [vmem:[%s289 + $0x98] sm:$0xff] %v2719
          %2784 = vst [vmem:[%s289 + $0xa0] sm:$0xff] %v2720
          %2785 = vst [vmem:[%s289 + $0xa8] sm:$0xff] %v2721
          %2786 = vst [vmem:[%s289 + $0xb0] sm:$0xff] %v2722
          %2787 = vst [vmem:[%s289 + $0xb8] sm:$0xff] %v2723
          %2788 = vst [vmem:[%s289 + $0xc0] sm:$0xff] %v2724
          %2789 = vst [vmem:[%s289 + $0xc8] sm:$0xff] %v2725
          %2790 = vst [vmem:[%s289 + $0xd0] sm:$0xff] %v2726
          %2791 = vst [vmem:[%s289 + $0xd8] sm:$0xff] %v2727
          %2792 = vst [vmem:[%s289 + $0xe0] sm:$0xff] %v2728
          %2793 = vst [vmem:[%s289 + $0xe8] sm:$0xff] %v2729
          %2794 = vst [vmem:[%s289 + $0xf0] sm:$0xff] %v2730
          %2795 = vst [vmem:[%s289 + $0xf8] sm:$0xff] %v2731
          %2796 = vst [vmem:[%s289 + $0x100] sm:$0xff] %v2732
          %2797 = vst [vmem:[%s289 + $0x108] sm:$0xff] %v2733
          %2798 = vst [vmem:[%s289 + $0x110] sm:$0xff] %v2734
          %2799 = vst [vmem:[%s289 + $0x118] sm:$0xff] %v2735
          %2800 = vst [vmem:[%s289 + $0x120] sm:$0xff] %v2736
          %2801 = vst [vmem:[%s289 + $0x128] sm:$0xff] %v2737
          %2802 = vst [vmem:[%s289 + $0x130] sm:$0xff] %v2738
          %2803 = vst [vmem:[%s289 + $0x138] sm:$0xff] %v2739
          %2804 = vst [vmem:[%s289 + $0x140] sm:$0xff] %v2740
          %2805 = vst [vmem:[%s289 + $0x148] sm:$0xff] %v2741
          %2806 = vst [vmem:[%s289 + $0x150] sm:$0xff] %v2742
          %2807 = vst [vmem:[%s289 + $0x158] sm:$0xff] %v2743
          %2808 = vst [vmem:[%s289 + $0x160] sm:$0xff] %v2744
          %2809 = vst [vmem:[%s289 + $0x168] sm:$0xff] %v2745
          %2810 = vst [vmem:[%s289 + $0x170] sm:$0xff] %v2746
          %2811 = vst [vmem:[%s289 + $0x178] sm:$0xff] %v2747
          %2812 = vst [vmem:[%s289 + $0x180] sm:$0xff] %v2748
          %2813 = vst [vmem:[%s289 + $0x188] sm:$0xff] %v2749
          %2814 = vst [vmem:[%s289 + $0x190] sm:$0xff] %v2750
          %2815 = vst [vmem:[%s289 + $0x198] sm:$0xff] %v2751
          %2816 = vst [vmem:[%s289 + $0x1a0] sm:$0xff] %v2752
          %2817 = vst [vmem:[%s289 + $0x1a8] sm:$0xff] %v2753
          %2818 = vst [vmem:[%s289 + $0x1b0] sm:$0xff] %v2754
          %2819 = vst [vmem:[%s289 + $0x1b8] sm:$0xff] %v2755
          %2820 = vst [vmem:[%s289 + $0x1c0] sm:$0xff] %v2756
          %2821 = vst [vmem:[%s289 + $0x1c8] sm:$0xff] %v2757
          %2822 = vst [vmem:[%s289 + $0x1d0] sm:$0xff] %v2758
          %2823 = vst [vmem:[%s289 + $0x1d8] sm:$0xff] %v2759
          %2824 = vst [vmem:[%s289 + $0x1e0] sm:$0xff] %v2760
          %2825 = vst [vmem:[%s289 + $0x1e8] sm:$0xff] %v2761
          %2826 = vst [vmem:[%s289 + $0x1f0] sm:$0xff] %v2762
          %2827 = vst [vmem:[%s289 + $0x1f8] sm:$0xff] %v2763
        $region56: #{tpu_custom_call.1} parent=31 // pred_fallthru
          _
        %s2828 = sand.u32 %s139, 1
        %s2829 = scalar_lea.sflag [#allocation10], %s2828
        %s2830 = sand.u32 %s139, 1
        %s2831 = smul.addr %s2830, 512
        %s2832 = scalar_lea.vmem [#allocation14], %s2831
        // Predicated region
        $region57: #{tpu_custom_call.1} parent=31 // pred_check
          %p2833 = pneg %p149
        $region58: #{tpu_custom_call.1} parent=31 // pred_check_branch
          %2835 = sbr.rel (%p2833) target = $region60
        $region59: #{tpu_custom_call.1} parent=31 // pred_region
          %s2836 = sld [smem:[#allocation5 + %s48]]
          %s2837 = smul.u32 64, %s2836
          %2839 = vsyncadd %s2829, 0
          %s2840 = smul.addr %s2837, 8
          %s2841 = scalar_lea.hbm %s7, %s2840
          %s2842 = sshll.u32 %s2832, 4
          %s2843 = int_to_ptr.vmem [resolvable:$true] %s2842
          %s2844 = sshll.u32 %s2841, 4
          %s2845 = int_to_ptr.hbm [resolvable:$true] %s2844
          %2850 = dma.vmem_to_hbm [thread:$0]  %s2843, 8192, %s2845, %s2829, 128, 128, 8
        $region60: #{tpu_custom_call.1} parent=31 // pred_fallthru
          _
      $region32: #{tpu_custom_call.1} parent=5 // pred_fallthru
        _
      %p2851 = scmp.le.s32.totalorder 2, %s43
      // Predicated region
      $region61: #{tpu_custom_call.1} parent=5 // pred_check
        %p2852 = pneg %p2851
      $region62: #{tpu_custom_call.1} parent=5 // pred_check_branch
        %2854 = sbr.rel (%p2852) target = $region64
      $region63: #{tpu_custom_call.1} parent=5 // pred_region
        %s2855 = ssub.s32 %s43, 2
        // Predicated region
        $region65: #{tpu_custom_call.1} parent=63 // pred_check
          %p2856 = pneg %p155
        $region66: #{tpu_custom_call.1} parent=63 // pred_check_branch
          %2858 = sbr.rel (%p2856) target = $region68
        $region67: #{tpu_custom_call.1} parent=63 // pred_region
          %s2859 = sand.u32 %s140, 1
          %s2860 = scalar_lea.sflag [#allocation10], %s2859
          %s2861 = sand.u32 %s140, 1
          %s2862 = smul.addr %s2861, 512
          %s2863 = scalar_lea.vmem [#allocation14], %s2862
          %2865 = dma.done %s2860, 8192
        $region68: #{tpu_custom_call.1} parent=63 // pred_fallthru
          _
      $region64: #{tpu_custom_call.1} parent=5 // pred_fallthru
        _
    $region6: #{tpu_custom_call.1} parent=1 // loop_footer
      %s47 = sadd.s32 1, %s43
    $region7: #{tpu_custom_call.1} parent=1 // loop_footer_branch
      %42 = sbr.rel target = $region3
    $region8: #{tpu_custom_call.1} parent=1 // loop_exit
      _
    %2866 = vsyncpa [#allocation9], 1
    %s2867 = scalar_lea.sflag [#allocation9], 1
    %2868 = vsyncpa %s2867, 1
    %2869 = vsyncpa [#allocation12], 1
    %2870 = vsyncpa [#allocation10], 1
    %s2871 = scalar_lea.sflag [#allocation10], 1
    %2872 = vsyncpa %s2871, 1

</llo_original>
